<compile_context>
chip_gen: v7x
topology: tpu7x:2x2x1
jax: 0.10.0
libtpu: 0.0.40
codegen_flags: <defaults>
</compile_context>

<pallas_src>
import functools
import math

import jax
import jax.numpy as jnp
from jax.experimental import pallas as pl
from jax.experimental.pallas import tpu as pltpu

BN_EPS = 1e-5
LEAKY_CONV = 0.02          # update_ff LeakyReLU slope
NORM_EPS = 1e-12           # F.normalize eps

MAX_TILE = 512             # N-tile; multiple of 128 (lanes) and 8 (sublanes)
# v5e scoped default is only 16 MiB; 48 MiB leaves headroom under v7x's
# 64 MiB physical VMEM and is far below v5e/v6e's 128 MiB.
VMEM_LIMIT = 48 * 1024 * 1024

_SMEM_SPEC = pl.BlockSpec(memory_space=pltpu.MemorySpace.SMEM)


def _pick_tile(n):
    # Lane-axis blocks must be a multiple of 128 or the full extent; sublane
    # blocks a multiple of 8 or full.  Full N (<=512) or 512 satisfies both.
    return n if n <= MAX_TILE else MAX_TILE


# ----------------------------------------------------------------------------
# Kernel A: pairwise negative squared distances, grid = (B, row tiles of N)
# ----------------------------------------------------------------------------
def _pairwise_kernel(xrow_ref, xfull_ref, out_ref):
    xr = xrow_ref[...]                                   # [TM, D] query rows
    xf = xfull_ref[...]                                  # [N,  D] all points
    # -||xi-xj||^2 = 2 xi.xj - |xi|^2 - |xj|^2.  Fold |xj|^2 into the single
    # MXU contraction by augmenting the operands:
    #   [2*xr | 1] . [xf | -|xf|^2]^T  =  2 xi.xj - |xj|^2
    xr2 = jnp.sum(xr * xr, axis=-1, keepdims=True)       # [TM, 1]
    xf2 = jnp.sum(xf * xf, axis=-1, keepdims=True)       # [N, 1]
    a = jnp.concatenate([2.0 * xr, jnp.ones_like(xr2)], axis=-1)   # [TM, D+1]
    b = jnp.concatenate([xf, -xf2], axis=-1)                        # [N, D+1]
    mm = jnp.einsum('id,jd->ij', a, b, preferred_element_type=jnp.float32)
    out_ref[...] = mm - xr2                               # lane-broadcast |xi|^2


def pairwise_neg_sqdist(x_bnd):
    B, N, D = x_bnd.shape
    tm = _pick_tile(N)
    return pl.pallas_call(
        _pairwise_kernel,
        out_shape=jax.ShapeDtypeStruct((B, N, N), jnp.float32),
        grid=(B, pl.cdiv(N, tm)),
        in_specs=[pl.BlockSpec((None, tm, D), lambda b, i: (b, i, 0)),
                  pl.BlockSpec((None, N, D), lambda b, i: (b, 0, 0))],
        out_specs=pl.BlockSpec((None, tm, N), lambda b, i: (b, i, 0)),
        compiler_params=pltpu.CompilerParams(
            dimension_semantics=("parallel", "parallel"),
            vmem_limit_bytes=VMEM_LIMIT),
    )(x_bnd, x_bnd)


# ----------------------------------------------------------------------------
# Kernel B1: Gram column + F.normalize denominator (Gram identity), grid = (B,)
# ----------------------------------------------------------------------------
def _gram_norm_kernel(gft_ref, sub_ref, invn_ref):
    gft = gft_ref[...]                                    # [k, D, N]
    # sub[i, n] = <gf[n, i, :], gf[n, 0, :]>   (== gm_matrix[..., 0])
    sub = jnp.sum(gft * gft[0:1], axis=1)                 # [k, N]
    sub2 = sub * sub
    # ||sub_gm[:, i, j]||^2 over the full point axis, without materializing
    # the [N, k, k] sub_gm tensor:
    n2 = jnp.einsum('in,jn->ij', sub2, sub2, preferred_element_type=jnp.float32)
    sub_ref[...] = sub
    invn_ref[...] = 1.0 / jnp.maximum(jnp.sqrt(n2), NORM_EPS)


def gram_norm_prepass(gfT):
    B, k, D, N = gfT.shape
    return pl.pallas_call(
        _gram_norm_kernel,
        out_shape=(jax.ShapeDtypeStruct((B, k, N), jnp.float32),
                   jax.ShapeDtypeStruct((B, k, k), jnp.float32)),
        grid=(B,),
        in_specs=[pl.BlockSpec((None, k, D, N), lambda b: (b, 0, 0, 0))],
        out_specs=(pl.BlockSpec((None, k, N), lambda b: (b, 0, 0)),
                   pl.BlockSpec((None, k, k), lambda b: (b, 0, 0))),
        compiler_params=pltpu.CompilerParams(
            dimension_semantics=("parallel",),
            vmem_limit_bytes=VMEM_LIMIT),
    )(gfT)


# ----------------------------------------------------------------------------
# Kernel B2: fused MolConv2 combine, grid = (B, N tiles), lane-dense output
# ----------------------------------------------------------------------------
def _combine_kernel(dist_ref, sub_ref, featn_ref, xcen_ref, invn_ref, dscal_ref,
                    wct_nb_ref, wct_gm_ref, csh_nb_ref, csh_gm_ref,
                    wut_nb_ref, wut_gm_ref, ush_ref, out_ref):
    dist = dist_ref[...]          # [k, TN]    squared knn distances
    sub = sub_ref[...]            # [k, TN]    Gram column (from B1)
    featn = featn_ref[...]        # [k, Cc, TN] neighbor feats (xyz pre-sliced)
    xcen = xcen_ref[...]          # [Cc, TN]   center feats
    invn = invn_ref[...]          # [k, k]     1 / F.normalize denominator
    k = dist.shape[0]

    # dist_ff: scalar 1x1 conv (BN folded) + sigmoid; scalars live in SMEM.
    w = jax.nn.sigmoid(dist * dscal_ref[0] + dscal_ref[1])           # [k, TN]

    # center_ff as lane-dense [channels, points] matmuls, output split into
    # the feat_nb channels and the gm2 channels so update_ff never needs a
    # lane-axis concat of [feat_nb | gm2].
    c_nb = jax.nn.sigmoid(
        jnp.dot(wct_nb_ref[...], xcen, preferred_element_type=jnp.float32)
        + csh_nb_ref[...])                                            # [Cc, TN]
    c_gm = jax.nn.sigmoid(
        jnp.dot(wct_gm_ref[...], xcen, preferred_element_type=jnp.float32)
        + csh_gm_ref[...])                                            # [k, TN]

    wut_nb = wut_nb_ref[...]      # [Co, Cc]
    wut_gm = wut_gm_ref[...]      # [Co, k]
    ush = ush_ref[...]            # [Co, 1]

    # update_ff (folded BN) + LeakyReLU per neighbor, then mean over k.
    # k is tiny (4), so a static unroll keeps every matmul 2-D with a
    # lane-dense [Co, TN] output (the store is a full-lane vst).
    acc = jnp.zeros((ush.shape[0], dist.shape[1]), jnp.float32)       # [Co, TN]
    for i in range(k):
        wi = w[i][None, :]                                            # [1, TN]
        gm2_i = sub[i][None, :] * sub * invn[i][:, None]              # [k, TN]
        f_nb = wi * featn[i] + c_nb                                   # [Cc, TN]
        f_gm = wi * gm2_i + c_gm                                      # [k, TN]
        u = (jnp.dot(wut_nb, f_nb, preferred_element_type=jnp.float32)
             + jnp.dot(wut_gm, f_gm, preferred_element_type=jnp.float32)
             + ush)                                                   # [Co, TN]
        acc = acc + jnp.where(u > 0, u, LEAKY_CONV * u)
    out_ref[...] = acc * (1.0 / k)


def molconv_combine(distT, subT, featnT, xcenT, inv_norm, kp):
    B, k, Cc, N = featnT.shape
    Co = kp['wut_nb'].shape[0]
    tn = _pick_tile(N)
    const = lambda b, i: (0, 0)
    return pl.pallas_call(
        _combine_kernel,
        out_shape=jax.ShapeDtypeStruct((B, Co, N), jnp.float32),
        grid=(B, pl.cdiv(N, tn)),
        in_specs=[
            pl.BlockSpec((None, k, tn), lambda b, i: (b, 0, i)),          # dist
            pl.BlockSpec((None, k, tn), lambda b, i: (b, 0, i)),          # sub
            pl.BlockSpec((None, k, Cc, tn), lambda b, i: (b, 0, 0, i)),   # feat_n
            pl.BlockSpec((None, Cc, tn), lambda b, i: (b, 0, i)),         # x_cen
            pl.BlockSpec((None, k, k), lambda b, i: (b, 0, 0)),           # inv_norm
            _SMEM_SPEC,                                                   # dist_ff scalars
            pl.BlockSpec((Cc, Cc), const),                                # wct_nb
            pl.BlockSpec((k, Cc), const),                                 # wct_gm
            pl.BlockSpec((Cc, 1), const),                                 # csh_nb
            pl.BlockSpec((k, 1), const),                                  # csh_gm
            pl.BlockSpec((Co, Cc), const),                                # wut_nb
            pl.BlockSpec((Co, k), const),                                 # wut_gm
            pl.BlockSpec((Co, 1), const),                                 # ush
        ],
        out_specs=pl.BlockSpec((None, Co, tn), lambda b, i: (b, 0, i)),
        compiler_params=pltpu.CompilerParams(
            dimension_semantics=("parallel", "parallel"),
            vmem_limit_bytes=VMEM_LIMIT),
    )(distT, subT, featnT, xcenT, inv_norm, kp['dist_scal'],
      kp['wct_nb'], kp['wct_gm'], kp['csh_nb'], kp['csh_gm'],
      kp['wut_nb'], kp['wut_gm'], kp['ush'])


# ----------------------------------------------------------------------------
# Parameter prep: split/transposed weights for the lane-dense kernels
# ----------------------------------------------------------------------------
def _prep_kernel_params(params, cc):
    wc, wu = params['wc'], params['wu']                  # [Cc,Cm], [Cm,Co]
    csh, ush = params['c_shift'], params['u_shift']      # [1,Cm],  [1,Co]
    return dict(
        dist_scal=params['dist_scal'],                   # (2,) -> SMEM
        wct_nb=wc[:, :cc].T, wct_gm=wc[:, cc:].T,        # [Cc,Cc], [k,Cc]
        csh_nb=csh[0, :cc][:, None], csh_gm=csh[0, cc:][:, None],
        wut_nb=wu[:cc, :].T, wut_gm=wu[cc:, :].T,        # [Co,Cc], [Co,k]
        ush=ush[0][:, None],                             # [Co,1]
    )


# ----------------------------------------------------------------------------
# MolConv2 forward (PyTorch: x [B, in_dim, N] -> [B, out_dim, N])
# ----------------------------------------------------------------------------
@functools.partial(jax.jit, static_argnames=('k', 'remove_xyz'))
def molconv2_forward(x_bdn, idx_base, params, *, k, remove_xyz):
    B, D, N = x_bdn.shape
    x_bnd = jnp.transpose(x_bdn, (0, 2, 1))              # [B,N,D] channels-last
    pd = pairwise_neg_sqdist(x_bnd)                      # Pallas kernel A
    # TODO(synk): top-k and the data-dependent gather have no clean Pallas
    # equivalent (lax.top_k / advanced indexing); for large N, fusing an
    # iterative per-row-tile top-k into kernel A would also avoid the
    # [B,N,N] f32 HBM round trip.
    vals, idx = jax.lax.top_k(pd, k)
    dist = -vals                                         # [B,N,k] squared dists
    idx_flat = (idx + idx_base).reshape(-1)
    gf = x_bnd.reshape(B * N, D)[idx_flat].reshape(B, N, k, D)

    # Layout plumbing (XLA side): point axis N into lanes; pre-slice the xyz
    # channels so no in-kernel unaligned slice is needed.
    gfT = jnp.transpose(gf, (0, 2, 3, 1))                # [B,k,D,N]
    distT = jnp.transpose(dist, (0, 2, 1))               # [B,k,N]
    subT, inv_norm = gram_norm_prepass(gfT)              # Pallas kernel B1
    if remove_xyz:
        featnT = gfT[:, :, 3:, :]                        # [B,k,Cc,N]
        xcenT = x_bdn[:, 3:, :]                          # [B,Cc,N]
    else:
        featnT, xcenT = gfT, x_bdn
    kp = _prep_kernel_params(params, cc=xcenT.shape[1])
    # Pallas kernel B2; already [B, out_dim, N] (lane-dense), no final transpose.
    return molconv_combine(distT, subT, featnT, xcenT, inv_norm, kp)


# ----------------------------------------------------------------------------
# Deterministic parameter construction (kaiming a=0.2, eval-mode BN folded)
# ----------------------------------------------------------------------------
def _kaiming_std(fan_in, a=0.2):
    return math.sqrt(2.0 / ((1.0 + a * a) * fan_in))


def make_molconv2_params(key, in_dim, out_dim, k, remove_xyz):
    cc = in_dim - 3 if remove_xyz else in_dim
    cm = cc + k
    k1, k2, k3 = jax.random.split(key, 3)
    bn = 1.0 / math.sqrt(1.0 + BN_EPS)     # eval-mode BN: gamma=1, mean=0, var=1
    wd = _kaiming_std(1) * jax.random.normal(k1, (), dtype=jnp.float32)
    wc = _kaiming_std(cc) * jax.random.normal(k2, (cc, cm), dtype=jnp.float32)
    wu = _kaiming_std(cm) * jax.random.normal(k3, (cm, out_dim), dtype=jnp.float32)
    return dict(
        dist_scal=jnp.stack([wd * bn, jnp.zeros((), jnp.float32)]),   # [w_eff, shift]
        wc=wc * bn,                                  # BN scale folded into weight
        c_shift=jnp.zeros((1, cm), jnp.float32),
        wu=wu * bn,
        u_shift=jnp.zeros((1, out_dim), jnp.float32),
    )


# ----------------------------------------------------------------------------
# Pure-JAX reference mirroring the PyTorch forward (for correctness check)
# ----------------------------------------------------------------------------
def molconv2_reference(x_bdn, idx_base, params, k, remove_xyz):
    hp = jax.lax.Precision.HIGHEST
    B, D, N = x_bdn.shape
    xT = jnp.transpose(x_bdn, (0, 2, 1))
    inner = -2.0 * jnp.einsum('bdi,bdj->bij', x_bdn, x_bdn, precision=hp)
    xx = jnp.sum(x_bdn * x_bdn, axis=1, keepdims=True)              # [B,1,N]
    pd = -xx - inner - jnp.transpose(xx, (0, 2, 1))
    vals, idx = jax.lax.top_k(pd, k)
    dist = -vals
    gf = xT.reshape(B * N, D)[(idx + idx_base).reshape(-1)].reshape(B, N, k, D)
    gm = jnp.einsum('bnkd,bnjd->bnkj', gf, gf, precision=hp)
    s = gm[..., 0]
    sub_gm = s[:, :, :, None] * s[:, :, None, :]
    norm = jnp.sqrt(jnp.sum(sub_gm * sub_gm, axis=1, keepdims=True))
    gm2 = sub_gm / jnp.maximum(norm, NORM_EPS)
    feat_nb = gf[..., 3:] if remove_xyz else gf
    x_cen = xT[..., 3:] if remove_xyz else xT
    w = jax.nn.sigmoid(dist * params['dist_scal'][0] + params['dist_scal'][1])
    c = jax.nn.sigmoid(jnp.einsum('bnc,cm->bnm', x_cen, params['wc'],
                                  precision=hp) + params['c_shift'])
    feat_n = jnp.concatenate([feat_nb, gm2], axis=-1)
    feat = w[..., None] * feat_n + c[:, :, None, :]
    u = jnp.einsum('bnkc,co->bnko', feat, params['wu'], precision=hp) + params['u_shift']
    u = jnp.where(u > 0, u, LEAKY_CONV * u)
    return jnp.transpose(jnp.mean(u, axis=2), (0, 2, 1))            # [B,out_dim,N]


# ----------------------------------------------------------------------------
if __name__ == "__main__":
    B, N, k = 2, 16, 4
    configs = [
        dict(in_dim=14, out_dim=16, remove_xyz=True),
        dict(in_dim=8, out_dim=8, remove_xyz=False),
    ]
    root = jax.random.PRNGKey(0)
    idx_base = (jnp.arange(B, dtype=jnp.int32) * N).reshape(B, 1, 1)

    for i, cfg in enumerate(configs):
        kx, kp = jax.random.split(jax.random.fold_in(root, i))
        x = jax.random.normal(kx, (B, cfg['in_dim'], N), dtype=jnp.float32)
        params = make_molconv2_params(kp, cfg['in_dim'], cfg['out_dim'], k,
                                      cfg['remove_xyz'])

        out = molconv2_forward(x, idx_base, params, k=k,
                               remove_xyz=cfg['remove_xyz'])
        jax.block_until_ready(out)
        assert out.shape == (B, cfg['out_dim'], N) and out.dtype == jnp.float32

        ref = molconv2_reference(x, idx_base, params, k, cfg['remove_xyz'])
        err = float(jnp.max(jnp.abs(out - ref)))
        assert err < 5e-3, f"config {i}: max abs err {err}"

    print("KERNEL_OK")
</pallas_src>

<mosaic_0001>
module attributes {stable_mosaic.version = 11 : i64} {
  func.func @_pairwise_kernel(%arg0: i32, %arg1: i32, %arg2: memref<1x16x14xf32, #tpu.memory_space<vmem>>, %arg3: memref<1x16x14xf32, #tpu.memory_space<vmem>>, %arg4: memref<1x16x16xf32, #tpu.memory_space<vmem>>) attributes {dimension_semantics = [#tpu.dimension_semantics<parallel>, #tpu.dimension_semantics<parallel>], iteration_bounds = array<i64: 2, 1>, scalar_prefetch = 0 : i64, scratch_operands = 0 : i64, tpu.core_type = #tpu.core_type<tc>, window_params = [{transform_indices = @transform_0, window_bounds = array<i64: 1, 16, 14>}, {transform_indices = @transform_1, window_bounds = array<i64: 1, 16, 14>}, {transform_indices = @transform_2, window_bounds = array<i64: 1, 16, 16>}]} {
    %c0 = arith.constant 0 : index
    %c0_0 = arith.constant 0 : index
    %c0_1 = arith.constant 0 : index
    %0 = vector.load %arg2[%c0, %c0_0, %c0_1] : memref<1x16x14xf32, #tpu.memory_space<vmem>>, vector<1x16x14xf32>
    %1 = vector.shape_cast %0 : vector<1x16x14xf32> to vector<16x14xf32>
    %c0_2 = arith.constant 0 : index
    %c0_3 = arith.constant 0 : index
    %c0_4 = arith.constant 0 : index
    %2 = vector.load %arg3[%c0_2, %c0_3, %c0_4] : memref<1x16x14xf32, #tpu.memory_space<vmem>>, vector<1x16x14xf32>
    %3 = vector.shape_cast %2 : vector<1x16x14xf32> to vector<16x14xf32>
    %4 = arith.mulf %1, %1 : vector<16x14xf32>
    %cst = arith.constant dense<0.000000e+00> : vector<16xf32>
    %5 = vector.multi_reduction <add>, %4, %cst [1] : vector<16x14xf32> to vector<16xf32>
    %6 = vector.shape_cast %5 : vector<16xf32> to vector<16x1xf32>
    %7 = arith.mulf %3, %3 : vector<16x14xf32>
    %cst_5 = arith.constant dense<0.000000e+00> : vector<16xf32>
    %8 = vector.multi_reduction <add>, %7, %cst_5 [1] : vector<16x14xf32> to vector<16xf32>
    %9 = vector.shape_cast %8 : vector<16xf32> to vector<16x1xf32>
    %cst_6 = arith.constant 2.000000e+00 : f32
    %10 = vector.broadcast %cst_6 : f32 to vector<16x14xf32>
    %11 = arith.mulf %10, %1 : vector<16x14xf32>
    %cst_7 = arith.constant 1.000000e+00 : f32
    %12 = vector.broadcast %cst_7 : f32 to vector<16x1xf32>
    %13 = tpu.concatenate %11, %12 in 1 : vector<16x14xf32>, vector<16x1xf32> -> vector<16x15xf32>
    %cst_8 = arith.constant 0.000000e+00 : f32
    %14 = vector.broadcast %cst_8 : f32 to vector<16x1xf32>
    %15 = arith.subf %14, %9 : vector<16x1xf32>
    %16 = tpu.concatenate %3, %15 in 1 : vector<16x14xf32>, vector<16x1xf32> -> vector<16x15xf32>
    "tpu.trace_start"() <{level = 10 : i32, message = "id,jd->ij"}> : () -> ()
    %cst_9 = arith.constant dense<0.000000e+00> : vector<16x16xf32>
    %17 = tpu.matmul %13, %16, %cst_9 {dimension_numbers = #tpu.dot_dimension_numbers<[1], [1], [0], [0], [0, 0, 1, 0], [], []>} : vector<16x15xf32>, vector<16x15xf32>, vector<16x16xf32> -> vector<16x16xf32>
    "tpu.trace_stop"() : () -> ()
    %18 = vector.broadcast %6 : vector<16x1xf32> to vector<16x16xf32>
    %19 = arith.subf %17, %18 : vector<16x16xf32>
    %c0_10 = arith.constant 0 : index
    %c0_11 = arith.constant 0 : index
    %c0_12 = arith.constant 0 : index
    %20 = vector.load %arg4[%c0_10, %c0_11, %c0_12] : memref<1x16x16xf32, #tpu.memory_space<vmem>>, vector<1x16x16xf32>
    %21 = vector.shape_cast %20 : vector<1x16x16xf32> to vector<16x16xf32>
    %22 = vector.shape_cast %19 : vector<16x16xf32> to vector<1x16x16xf32>
    tpu.vector_store %arg4[%c0_10, %c0_11, %c0_12], %22 {strides = array<i32>} : memref<1x16x16xf32, #tpu.memory_space<vmem>>, vector<1x16x16xf32>,
    return
  }
  func.func @transform_0(%arg0: i32, %arg1: i32) -> (i32, i32, i32) {
    %c0_i32 = arith.constant 0 : i32
    %c0_i32_0 = arith.constant 0 : i32
    return %arg0, %arg1, %c0_i32 : i32, i32, i32
  }
  func.func @transform_1(%arg0: i32, %arg1: i32) -> (i32, i32, i32) {
    %c0_i32 = arith.constant 0 : i32
    %c0_i32_0 = arith.constant 0 : i32
    %c0_i32_1 = arith.constant 0 : i32
    return %arg0, %c0_i32, %c0_i32_0 : i32, i32, i32
  }
  func.func @transform_2(%arg0: i32, %arg1: i32) -> (i32, i32, i32) {
    %c0_i32 = arith.constant 0 : i32
    %c0_i32_0 = arith.constant 0 : i32
    return %arg0, %arg1, %c0_i32 : i32, i32, i32
  }
}

module attributes {stable_mosaic.version = 11 : i64} {
  func.func @_gram_norm_kernel(%arg0: i32, %arg1: memref<1x4x14x16xf32, #tpu.memory_space<vmem>>, %arg2: memref<1x4x16xf32, #tpu.memory_space<vmem>>, %arg3: memref<1x4x4xf32, #tpu.memory_space<vmem>>) attributes {dimension_semantics = [#tpu.dimension_semantics<parallel>], iteration_bounds = array<i64: 2>, scalar_prefetch = 0 : i64, scratch_operands = 0 : i64, tpu.core_type = #tpu.core_type<tc>, window_params = [{transform_indices = @transform_0, window_bounds = array<i64: 1, 4, 14, 16>}, {transform_indices = @transform_1, window_bounds = array<i64: 1, 4, 16>}, {transform_indices = @transform_2, window_bounds = array<i64: 1, 4, 4>}]} {
    %c0 = arith.constant 0 : index
    %c0_0 = arith.constant 0 : index
    %c0_1 = arith.constant 0 : index
    %c0_2 = arith.constant 0 : index
    %0 = vector.load %arg1[%c0, %c0_0, %c0_1, %c0_2] : memref<1x4x14x16xf32, #tpu.memory_space<vmem>>, vector<1x4x14x16xf32>
    %1 = vector.shape_cast %0 : vector<1x4x14x16xf32> to vector<4x14x16xf32>
    %2 = vector.extract_strided_slice %1 {offsets = [0, 0, 0], sizes = [1, 14, 16], strides = [1, 1, 1]} : vector<4x14x16xf32> to vector<1x14x16xf32>
    %3 = vector.broadcast %2 : vector<1x14x16xf32> to vector<4x14x16xf32>
    %4 = arith.mulf %1, %3 : vector<4x14x16xf32>
    %cst = arith.constant dense<0.000000e+00> : vector<4x16xf32>
    %5 = vector.multi_reduction <add>, %4, %cst [1] : vector<4x14x16xf32> to vector<4x16xf32>
    %6 = arith.mulf %5, %5 : vector<4x16xf32>
    "tpu.trace_start"() <{level = 10 : i32, message = "in,jn->ij"}> : () -> ()
    %cst_3 = arith.constant dense<0.000000e+00> : vector<4x4xf32>
    %7 = tpu.matmul %6, %6, %cst_3 {dimension_numbers = #tpu.dot_dimension_numbers<[1], [1], [0], [0], [0, 0, 1, 0], [], []>} : vector<4x16xf32>, vector<4x16xf32>, vector<4x4xf32> -> vector<4x4xf32>
    "tpu.trace_stop"() : () -> ()
    %c0_4 = arith.constant 0 : index
    %c0_5 = arith.constant 0 : index
    %c0_6 = arith.constant 0 : index
    %8 = vector.load %arg2[%c0_4, %c0_5, %c0_6] : memref<1x4x16xf32, #tpu.memory_space<vmem>>, vector<1x4x16xf32>
    %9 = vector.shape_cast %8 : vector<1x4x16xf32> to vector<4x16xf32>
    %10 = vector.shape_cast %5 : vector<4x16xf32> to vector<1x4x16xf32>
    tpu.vector_store %arg2[%c0_4, %c0_5, %c0_6], %10 {strides = array<i32>} : memref<1x4x16xf32, #tpu.memory_space<vmem>>, vector<1x4x16xf32>,
    %11 = math.sqrt %7 : vector<4x4xf32>
    %cst_7 = arith.constant 9.99999996E-13 : f32
    %12 = vector.broadcast %cst_7 : f32 to vector<4x4xf32>
    %13 = arith.maximumf %11, %12 : vector<4x4xf32>
    %cst_8 = arith.constant 1.000000e+00 : f32
    %14 = vector.broadcast %cst_8 : f32 to vector<4x4xf32>
    %15 = arith.divf %14, %13 : vector<4x4xf32>
    %c0_9 = arith.constant 0 : index
    %c0_10 = arith.constant 0 : index
    %c0_11 = arith.constant 0 : index
    %16 = vector.load %arg3[%c0_9, %c0_10, %c0_11] : memref<1x4x4xf32, #tpu.memory_space<vmem>>, vector<1x4x4xf32>
    %17 = vector.shape_cast %16 : vector<1x4x4xf32> to vector<4x4xf32>
    %18 = vector.shape_cast %15 : vector<4x4xf32> to vector<1x4x4xf32>
    tpu.vector_store %arg3[%c0_9, %c0_10, %c0_11], %18 {strides = array<i32>} : memref<1x4x4xf32, #tpu.memory_space<vmem>>, vector<1x4x4xf32>,
    return
  }
  func.func @transform_0(%arg0: i32) -> (i32, i32, i32, i32) {
    %c0_i32 = arith.constant 0 : i32
    %c0_i32_0 = arith.constant 0 : i32
    %c0_i32_1 = arith.constant 0 : i32
    %c0_i32_2 = arith.constant 0 : i32
    return %arg0, %c0_i32, %c0_i32_0, %c0_i32_1 : i32, i32, i32, i32
  }
  func.func @transform_1(%arg0: i32) -> (i32, i32, i32) {
    %c0_i32 = arith.constant 0 : i32
    %c0_i32_0 = arith.constant 0 : i32
    %c0_i32_1 = arith.constant 0 : i32
    return %arg0, %c0_i32, %c0_i32_0 : i32, i32, i32
  }
  func.func @transform_2(%arg0: i32) -> (i32, i32, i32) {
    %c0_i32 = arith.constant 0 : i32
    %c0_i32_0 = arith.constant 0 : i32
    %c0_i32_1 = arith.constant 0 : i32
    return %arg0, %c0_i32, %c0_i32_0 : i32, i32, i32
  }
}

module attributes {stable_mosaic.version = 11 : i64} {
  func.func @_combine_kernel(%arg0: i32, %arg1: i32, %arg2: memref<1x4x16xf32, #tpu.memory_space<vmem>>, %arg3: memref<1x4x16xf32, #tpu.memory_space<vmem>>, %arg4: memref<1x4x11x16xf32, #tpu.memory_space<vmem>>, %arg5: memref<1x11x16xf32, #tpu.memory_space<vmem>>, %arg6: memref<1x4x4xf32, #tpu.memory_space<vmem>>, %arg7: memref<2xf32, #tpu.memory_space<smem>>, %arg8: memref<11x11xf32, #tpu.memory_space<vmem>>, %arg9: memref<4x11xf32, #tpu.memory_space<vmem>>, %arg10: memref<11x1xf32, #tpu.memory_space<vmem>>, %arg11: memref<4x1xf32, #tpu.memory_space<vmem>>, %arg12: memref<16x11xf32, #tpu.memory_space<vmem>>, %arg13: memref<16x4xf32, #tpu.memory_space<vmem>>, %arg14: memref<16x1xf32, #tpu.memory_space<vmem>>, %arg15: memref<1x16x16xf32, #tpu.memory_space<vmem>>) attributes {dimension_semantics = [#tpu.dimension_semantics<parallel>, #tpu.dimension_semantics<parallel>], iteration_bounds = array<i64: 2, 1>, scalar_prefetch = 0 : i64, scratch_operands = 0 : i64, tpu.core_type = #tpu.core_type<tc>, window_params = [{transform_indices = @transform_0, window_bounds = array<i64: 1, 4, 16>}, {transform_indices = @transform_1, window_bounds = array<i64: 1, 4, 16>}, {transform_indices = @transform_2, window_bounds = array<i64: 1, 4, 11, 16>}, {transform_indices = @transform_3, window_bounds = array<i64: 1, 11, 16>}, {transform_indices = @transform_4, window_bounds = array<i64: 1, 4, 4>}, {transform_indices = @transform_5, window_bounds = array<i64: 2>}, {pipeline_mode = #tpu.pipeline_mode<synchronous>, transform_indices = @transform_6, window_bounds = array<i64: 11, 11>}, {pipeline_mode = #tpu.pipeline_mode<synchronous>, transform_indices = @transform_7, window_bounds = array<i64: 4, 11>}, {pipeline_mode = #tpu.pipeline_mode<synchronous>, transform_indices = @transform_8, window_bounds = array<i64: 11, 1>}, {pipeline_mode = #tpu.pipeline_mode<synchronous>, transform_indices = @transform_9, window_bounds = array<i64: 4, 1>}, {pipeline_mode = #tpu.pipeline_mode<synchronous>, transform_indices = @transform_10, window_bounds = array<i64: 16, 11>}, {pipeline_mode = #tpu.pipeline_mode<synchronous>, transform_indices = @transform_11, window_bounds = array<i64: 16, 4>}, {pipeline_mode = #tpu.pipeline_mode<synchronous>, transform_indices = @transform_12, window_bounds = array<i64: 16, 1>}, {transform_indices = @transform_13, window_bounds = array<i64: 1, 16, 16>}]} {
    %c0 = arith.constant 0 : index
    %c0_0 = arith.constant 0 : index
    %c0_1 = arith.constant 0 : index
    %0 = vector.load %arg2[%c0, %c0_0, %c0_1] : memref<1x4x16xf32, #tpu.memory_space<vmem>>, vector<1x4x16xf32>
    %1 = vector.shape_cast %0 : vector<1x4x16xf32> to vector<4x16xf32>
    %c0_2 = arith.constant 0 : index
    %c0_3 = arith.constant 0 : index
    %c0_4 = arith.constant 0 : index
    %2 = vector.load %arg3[%c0_2, %c0_3, %c0_4] : memref<1x4x16xf32, #tpu.memory_space<vmem>>, vector<1x4x16xf32>
    %3 = vector.shape_cast %2 : vector<1x4x16xf32> to vector<4x16xf32>
    %c0_5 = arith.constant 0 : index
    %c0_6 = arith.constant 0 : index
    %c0_7 = arith.constant 0 : index
    %c0_8 = arith.constant 0 : index
    %4 = vector.load %arg4[%c0_5, %c0_6, %c0_7, %c0_8] : memref<1x4x11x16xf32, #tpu.memory_space<vmem>>, vector<1x4x11x16xf32>
    %5 = vector.shape_cast %4 : vector<1x4x11x16xf32> to vector<4x11x16xf32>
    %c0_9 = arith.constant 0 : index
    %c0_10 = arith.constant 0 : index
    %c0_11 = arith.constant 0 : index
    %6 = vector.load %arg5[%c0_9, %c0_10, %c0_11] : memref<1x11x16xf32, #tpu.memory_space<vmem>>, vector<1x11x16xf32>
    %7 = vector.shape_cast %6 : vector<1x11x16xf32> to vector<11x16xf32>
    %c0_12 = arith.constant 0 : index
    %c0_13 = arith.constant 0 : index
    %c0_14 = arith.constant 0 : index
    %8 = vector.load %arg6[%c0_12, %c0_13, %c0_14] : memref<1x4x4xf32, #tpu.memory_space<vmem>>, vector<1x4x4xf32>
    %9 = vector.shape_cast %8 : vector<1x4x4xf32> to vector<4x4xf32>
    %c0_15 = arith.constant 0 : index
    %10 = memref.load %arg7[%c0_15] : memref<2xf32, #tpu.memory_space<smem>>
    %11 = vector.broadcast %10 : f32 to vector<4x16xf32>
    %12 = arith.mulf %1, %11 : vector<4x16xf32>
    %c1 = arith.constant 1 : index
    %13 = memref.load %arg7[%c1] : memref<2xf32, #tpu.memory_space<smem>>
    %14 = vector.broadcast %13 : f32 to vector<4x16xf32>
    %15 = arith.addf %12, %14 : vector<4x16xf32>
    %16 = arith.negf %15 : vector<4x16xf32>
    %17 = math.exp %16 : vector<4x16xf32>
    %cst = arith.constant 1.000000e+00 : f32
    %18 = vector.broadcast %cst : f32 to vector<4x16xf32>
    %19 = arith.addf %18, %17 : vector<4x16xf32>
    %20 = arith.divf %18, %19 : vector<4x16xf32>
    %c0_16 = arith.constant 0 : index
    %c0_17 = arith.constant 0 : index
    %21 = vector.load %arg8[%c0_16, %c0_17] : memref<11x11xf32, #tpu.memory_space<vmem>>, vector<11x11xf32>
    %cst_18 = arith.constant dense<0.000000e+00> : vector<11x16xf32>
    %22 = tpu.matmul %21, %7, %cst_18 {dimension_numbers = #tpu.dot_dimension_numbers<[1], [0], [0], [1], [0, 0, 1, 1], [], []>} : vector<11x11xf32>, vector<11x16xf32>, vector<11x16xf32> -> vector<11x16xf32>
    %c0_19 = arith.constant 0 : index
    %c0_20 = arith.constant 0 : index
    %23 = vector.load %arg10[%c0_19, %c0_20] : memref<11x1xf32, #tpu.memory_space<vmem>>, vector<11x1xf32>
    %24 = vector.broadcast %23 : vector<11x1xf32> to vector<11x16xf32>
    %25 = arith.addf %22, %24 : vector<11x16xf32>
    %26 = arith.negf %25 : vector<11x16xf32>
    %27 = math.exp %26 : vector<11x16xf32>
    %cst_21 = arith.constant 1.000000e+00 : f32
    %28 = vector.broadcast %cst_21 : f32 to vector<11x16xf32>
    %29 = arith.addf %28, %27 : vector<11x16xf32>
    %30 = arith.divf %28, %29 : vector<11x16xf32>
    %c0_22 = arith.constant 0 : index
    %c0_23 = arith.constant 0 : index
    %31 = vector.load %arg9[%c0_22, %c0_23] : memref<4x11xf32, #tpu.memory_space<vmem>>, vector<4x11xf32>
    %cst_24 = arith.constant dense<0.000000e+00> : vector<4x16xf32>
    %32 = tpu.matmul %31, %7, %cst_24 {dimension_numbers = #tpu.dot_dimension_numbers<[1], [0], [0], [1], [0, 0, 1, 1], [], []>} : vector<4x11xf32>, vector<11x16xf32>, vector<4x16xf32> -> vector<4x16xf32>
    %c0_25 = arith.constant 0 : index
    %c0_26 = arith.constant 0 : index
    %33 = vector.load %arg11[%c0_25, %c0_26] : memref<4x1xf32, #tpu.memory_space<vmem>>, vector<4x1xf32>
    %34 = vector.broadcast %33 : vector<4x1xf32> to vector<4x16xf32>
    %35 = arith.addf %32, %34 : vector<4x16xf32>
    %36 = arith.negf %35 : vector<4x16xf32>
    %37 = math.exp %36 : vector<4x16xf32>
    %cst_27 = arith.constant 1.000000e+00 : f32
    %38 = vector.broadcast %cst_27 : f32 to vector<4x16xf32>
    %39 = arith.addf %38, %37 : vector<4x16xf32>
    %40 = arith.divf %38, %39 : vector<4x16xf32>
    %c0_28 = arith.constant 0 : index
    %c0_29 = arith.constant 0 : index
    %41 = vector.load %arg12[%c0_28, %c0_29] : memref<16x11xf32, #tpu.memory_space<vmem>>, vector<16x11xf32>
    %c0_30 = arith.constant 0 : index
    %c0_31 = arith.constant 0 : index
    %42 = vector.load %arg13[%c0_30, %c0_31] : memref<16x4xf32, #tpu.memory_space<vmem>>, vector<16x4xf32>
    %c0_32 = arith.constant 0 : index
    %c0_33 = arith.constant 0 : index
    %43 = vector.load %arg14[%c0_32, %c0_33] : memref<16x1xf32, #tpu.memory_space<vmem>>, vector<16x1xf32>
    %cst_34 = arith.constant 0.000000e+00 : f32
    %44 = vector.broadcast %cst_34 : f32 to vector<16x16xf32>
    %45 = vector.extract_strided_slice %20 {offsets = [0, 0], sizes = [1, 16], strides = [1, 1]} : vector<4x16xf32> to vector<1x16xf32>
    %46 = vector.shape_cast %45 : vector<1x16xf32> to vector<16xf32>
    %47 = vector.shape_cast %46 : vector<16xf32> to vector<1x16xf32>
    %48 = vector.extract_strided_slice %3 {offsets = [0, 0], sizes = [1, 16], strides = [1, 1]} : vector<4x16xf32> to vector<1x16xf32>
    %49 = vector.shape_cast %48 : vector<1x16xf32> to vector<16xf32>
    %50 = vector.shape_cast %49 : vector<16xf32> to vector<1x16xf32>
    %51 = vector.broadcast %50 : vector<1x16xf32> to vector<4x16xf32>
    %52 = arith.mulf %51, %3 : vector<4x16xf32>
    %53 = vector.extract_strided_slice %9 {offsets = [0, 0], sizes = [1, 4], strides = [1, 1]} : vector<4x4xf32> to vector<1x4xf32>
    %54 = vector.shape_cast %53 : vector<1x4xf32> to vector<4xf32>
    %55 = vector.shape_cast %54 : vector<4xf32> to vector<4x1xf32>
    %56 = vector.broadcast %55 : vector<4x1xf32> to vector<4x16xf32>
    %57 = arith.mulf %52, %56 : vector<4x16xf32>
    %58 = vector.extract_strided_slice %5 {offsets = [0, 0, 0], sizes = [1, 11, 16], strides = [1, 1, 1]} : vector<4x11x16xf32> to vector<1x11x16xf32>
    %59 = vector.shape_cast %58 : vector<1x11x16xf32> to vector<11x16xf32>
    %60 = vector.broadcast %47 : vector<1x16xf32> to vector<11x16xf32>
    %61 = arith.mulf %60, %59 : vector<11x16xf32>
    %62 = arith.addf %61, %30 : vector<11x16xf32>
    %63 = vector.broadcast %47 : vector<1x16xf32> to vector<4x16xf32>
    %64 = arith.mulf %63, %57 : vector<4x16xf32>
    %65 = arith.addf %64, %40 : vector<4x16xf32>
    %cst_35 = arith.constant dense<0.000000e+00> : vector<16x16xf32>
    %66 = tpu.matmul %41, %62, %cst_35 {dimension_numbers = #tpu.dot_dimension_numbers<[1], [0], [0], [1], [0, 0, 1, 1], [], []>} : vector<16x11xf32>, vector<11x16xf32>, vector<16x16xf32> -> vector<16x16xf32>
    %cst_36 = arith.constant dense<0.000000e+00> : vector<16x16xf32>
    %67 = tpu.matmul %42, %65, %cst_36 {dimension_numbers = #tpu.dot_dimension_numbers<[1], [0], [0], [1], [0, 0, 1, 1], [], []>} : vector<16x4xf32>, vector<4x16xf32>, vector<16x16xf32> -> vector<16x16xf32>
    %68 = arith.addf %66, %67 : vector<16x16xf32>
    %69 = vector.broadcast %43 : vector<16x1xf32> to vector<16x16xf32>
    %70 = arith.addf %68, %69 : vector<16x16xf32>
    %cst_37 = arith.constant 0.000000e+00 : f32
    %71 = vector.broadcast %cst_37 : f32 to vector<16x16xf32>
    %72 = arith.cmpf ogt, %70, %71 : vector<16x16xf32>
    %cst_38 = arith.constant 2.000000e-02 : f32
    %73 = vector.broadcast %cst_38 : f32 to vector<16x16xf32>
    %74 = arith.mulf %73, %70 : vector<16x16xf32>
    %75 = arith.select %72, %70, %74 : vector<16x16xi1>, vector<16x16xf32>
    %76 = arith.addf %44, %75 : vector<16x16xf32>
    %77 = vector.extract_strided_slice %20 {offsets = [1, 0], sizes = [1, 16], strides = [1, 1]} : vector<4x16xf32> to vector<1x16xf32>
    %78 = vector.shape_cast %77 : vector<1x16xf32> to vector<16xf32>
    %79 = vector.shape_cast %78 : vector<16xf32> to vector<1x16xf32>
    %80 = vector.extract_strided_slice %3 {offsets = [1, 0], sizes = [1, 16], strides = [1, 1]} : vector<4x16xf32> to vector<1x16xf32>
    %81 = vector.shape_cast %80 : vector<1x16xf32> to vector<16xf32>
    %82 = vector.shape_cast %81 : vector<16xf32> to vector<1x16xf32>
    %83 = vector.broadcast %82 : vector<1x16xf32> to vector<4x16xf32>
    %84 = arith.mulf %83, %3 : vector<4x16xf32>
    %85 = vector.extract_strided_slice %9 {offsets = [1, 0], sizes = [1, 4], strides = [1, 1]} : vector<4x4xf32> to vector<1x4xf32>
    %86 = vector.shape_cast %85 : vector<1x4xf32> to vector<4xf32>
    %87 = vector.shape_cast %86 : vector<4xf32> to vector<4x1xf32>
    %88 = vector.broadcast %87 : vector<4x1xf32> to vector<4x16xf32>
    %89 = arith.mulf %84, %88 : vector<4x16xf32>
    %90 = vector.extract_strided_slice %5 {offsets = [1, 0, 0], sizes = [1, 11, 16], strides = [1, 1, 1]} : vector<4x11x16xf32> to vector<1x11x16xf32>
    %91 = vector.shape_cast %90 : vector<1x11x16xf32> to vector<11x16xf32>
    %92 = vector.broadcast %79 : vector<1x16xf32> to vector<11x16xf32>
    %93 = arith.mulf %92, %91 : vector<11x16xf32>
    %94 = arith.addf %93, %30 : vector<11x16xf32>
    %95 = vector.broadcast %79 : vector<1x16xf32> to vector<4x16xf32>
    %96 = arith.mulf %95, %89 : vector<4x16xf32>
    %97 = arith.addf %96, %40 : vector<4x16xf32>
    %cst_39 = arith.constant dense<0.000000e+00> : vector<16x16xf32>
    %98 = tpu.matmul %41, %94, %cst_39 {dimension_numbers = #tpu.dot_dimension_numbers<[1], [0], [0], [1], [0, 0, 1, 1], [], []>} : vector<16x11xf32>, vector<11x16xf32>, vector<16x16xf32> -> vector<16x16xf32>
    %cst_40 = arith.constant dense<0.000000e+00> : vector<16x16xf32>
    %99 = tpu.matmul %42, %97, %cst_40 {dimension_numbers = #tpu.dot_dimension_numbers<[1], [0], [0], [1], [0, 0, 1, 1], [], []>} : vector<16x4xf32>, vector<4x16xf32>, vector<16x16xf32> -> vector<16x16xf32>
    %100 = arith.addf %98, %99 : vector<16x16xf32>
    %101 = vector.broadcast %43 : vector<16x1xf32> to vector<16x16xf32>
    %102 = arith.addf %100, %101 : vector<16x16xf32>
    %cst_41 = arith.constant 0.000000e+00 : f32
    %103 = vector.broadcast %cst_41 : f32 to vector<16x16xf32>
    %104 = arith.cmpf ogt, %102, %103 : vector<16x16xf32>
    %cst_42 = arith.constant 2.000000e-02 : f32
    %105 = vector.broadcast %cst_42 : f32 to vector<16x16xf32>
    %106 = arith.mulf %105, %102 : vector<16x16xf32>
    %107 = arith.select %104, %102, %106 : vector<16x16xi1>, vector<16x16xf32>
    %108 = arith.addf %76, %107 : vector<16x16xf32>
    %109 = vector.extract_strided_slice %20 {offsets = [2, 0], sizes = [1, 16], strides = [1, 1]} : vector<4x16xf32> to vector<1x16xf32>
    %110 = vector.shape_cast %109 : vector<1x16xf32> to vector<16xf32>
    %111 = vector.shape_cast %110 : vector<16xf32> to vector<1x16xf32>
    %112 = vector.extract_strided_slice %3 {offsets = [2, 0], sizes = [1, 16], strides = [1, 1]} : vector<4x16xf32> to vector<1x16xf32>
    %113 = vector.shape_cast %112 : vector<1x16xf32> to vector<16xf32>
    %114 = vector.shape_cast %113 : vector<16xf32> to vector<1x16xf32>
    %115 = vector.broadcast %114 : vector<1x16xf32> to vector<4x16xf32>
    %116 = arith.mulf %115, %3 : vector<4x16xf32>
    %117 = vector.extract_strided_slice %9 {offsets = [2, 0], sizes = [1, 4], strides = [1, 1]} : vector<4x4xf32> to vector<1x4xf32>
    %118 = vector.shape_cast %117 : vector<1x4xf32> to vector<4xf32>
    %119 = vector.shape_cast %118 : vector<4xf32> to vector<4x1xf32>
    %120 = vector.broadcast %119 : vector<4x1xf32> to vector<4x16xf32>
    %121 = arith.mulf %116, %120 : vector<4x16xf32>
    %122 = vector.extract_strided_slice %5 {offsets = [2, 0, 0], sizes = [1, 11, 16], strides = [1, 1, 1]} : vector<4x11x16xf32> to vector<1x11x16xf32>
    %123 = vector.shape_cast %122 : vector<1x11x16xf32> to vector<11x16xf32>
    %124 = vector.broadcast %111 : vector<1x16xf32> to vector<11x16xf32>
    %125 = arith.mulf %124, %123 : vector<11x16xf32>
    %126 = arith.addf %125, %30 : vector<11x16xf32>
    %127 = vector.broadcast %111 : vector<1x16xf32> to vector<4x16xf32>
    %128 = arith.mulf %127, %121 : vector<4x16xf32>
    %129 = arith.addf %128, %40 : vector<4x16xf32>
    %cst_43 = arith.constant dense<0.000000e+00> : vector<16x16xf32>
    %130 = tpu.matmul %41, %126, %cst_43 {dimension_numbers = #tpu.dot_dimension_numbers<[1], [0], [0], [1], [0, 0, 1, 1], [], []>} : vector<16x11xf32>, vector<11x16xf32>, vector<16x16xf32> -> vector<16x16xf32>
    %cst_44 = arith.constant dense<0.000000e+00> : vector<16x16xf32>
    %131 = tpu.matmul %42, %129, %cst_44 {dimension_numbers = #tpu.dot_dimension_numbers<[1], [0], [0], [1], [0, 0, 1, 1], [], []>} : vector<16x4xf32>, vector<4x16xf32>, vector<16x16xf32> -> vector<16x16xf32>
    %132 = arith.addf %130, %131 : vector<16x16xf32>
    %133 = vector.broadcast %43 : vector<16x1xf32> to vector<16x16xf32>
    %134 = arith.addf %132, %133 : vector<16x16xf32>
    %cst_45 = arith.constant 0.000000e+00 : f32
    %135 = vector.broadcast %cst_45 : f32 to vector<16x16xf32>
    %136 = arith.cmpf ogt, %134, %135 : vector<16x16xf32>
    %cst_46 = arith.constant 2.000000e-02 : f32
    %137 = vector.broadcast %cst_46 : f32 to vector<16x16xf32>
    %138 = arith.mulf %137, %134 : vector<16x16xf32>
    %139 = arith.select %136, %134, %138 : vector<16x16xi1>, vector<16x16xf32>
    %140 = arith.addf %108, %139 : vector<16x16xf32>
    %141 = vector.extract_strided_slice %20 {offsets = [3, 0], sizes = [1, 16], strides = [1, 1]} : vector<4x16xf32> to vector<1x16xf32>
    %142 = vector.shape_cast %141 : vector<1x16xf32> to vector<16xf32>
    %143 = vector.shape_cast %142 : vector<16xf32> to vector<1x16xf32>
    %144 = vector.extract_strided_slice %3 {offsets = [3, 0], sizes = [1, 16], strides = [1, 1]} : vector<4x16xf32> to vector<1x16xf32>
    %145 = vector.shape_cast %144 : vector<1x16xf32> to vector<16xf32>
    %146 = vector.shape_cast %145 : vector<16xf32> to vector<1x16xf32>
    %147 = vector.broadcast %146 : vector<1x16xf32> to vector<4x16xf32>
    %148 = arith.mulf %147, %3 : vector<4x16xf32>
    %149 = vector.extract_strided_slice %9 {offsets = [3, 0], sizes = [1, 4], strides = [1, 1]} : vector<4x4xf32> to vector<1x4xf32>
    %150 = vector.shape_cast %149 : vector<1x4xf32> to vector<4xf32>
    %151 = vector.shape_cast %150 : vector<4xf32> to vector<4x1xf32>
    %152 = vector.broadcast %151 : vector<4x1xf32> to vector<4x16xf32>
    %153 = arith.mulf %148, %152 : vector<4x16xf32>
    %154 = vector.extract_strided_slice %5 {offsets = [3, 0, 0], sizes = [1, 11, 16], strides = [1, 1, 1]} : vector<4x11x16xf32> to vector<1x11x16xf32>
    %155 = vector.shape_cast %154 : vector<1x11x16xf32> to vector<11x16xf32>
    %156 = vector.broadcast %143 : vector<1x16xf32> to vector<11x16xf32>
    %157 = arith.mulf %156, %155 : vector<11x16xf32>
    %158 = arith.addf %157, %30 : vector<11x16xf32>
    %159 = vector.broadcast %143 : vector<1x16xf32> to vector<4x16xf32>
    %160 = arith.mulf %159, %153 : vector<4x16xf32>
    %161 = arith.addf %160, %40 : vector<4x16xf32>
    %cst_47 = arith.constant dense<0.000000e+00> : vector<16x16xf32>
    %162 = tpu.matmul %41, %158, %cst_47 {dimension_numbers = #tpu.dot_dimension_numbers<[1], [0], [0], [1], [0, 0, 1, 1], [], []>} : vector<16x11xf32>, vector<11x16xf32>, vector<16x16xf32> -> vector<16x16xf32>
    %cst_48 = arith.constant dense<0.000000e+00> : vector<16x16xf32>
    %163 = tpu.matmul %42, %161, %cst_48 {dimension_numbers = #tpu.dot_dimension_numbers<[1], [0], [0], [1], [0, 0, 1, 1], [], []>} : vector<16x4xf32>, vector<4x16xf32>, vector<16x16xf32> -> vector<16x16xf32>
    %164 = arith.addf %162, %163 : vector<16x16xf32>
    %165 = vector.broadcast %43 : vector<16x1xf32> to vector<16x16xf32>
    %166 = arith.addf %164, %165 : vector<16x16xf32>
    %cst_49 = arith.constant 0.000000e+00 : f32
    %167 = vector.broadcast %cst_49 : f32 to vector<16x16xf32>
    %168 = arith.cmpf ogt, %166, %167 : vector<16x16xf32>
    %cst_50 = arith.constant 2.000000e-02 : f32
    %169 = vector.broadcast %cst_50 : f32 to vector<16x16xf32>
    %170 = arith.mulf %169, %166 : vector<16x16xf32>
    %171 = arith.select %168, %166, %170 : vector<16x16xi1>, vector<16x16xf32>
    %172 = arith.addf %140, %171 : vector<16x16xf32>
    %cst_51 = arith.constant 2.500000e-01 : f32
    %173 = vector.broadcast %cst_51 : f32 to vector<16x16xf32>
    %174 = arith.mulf %172, %173 : vector<16x16xf32>
    %c0_52 = arith.constant 0 : index
    %c0_53 = arith.constant 0 : index
    %c0_54 = arith.constant 0 : index
    %175 = vector.load %arg15[%c0_52, %c0_53, %c0_54] : memref<1x16x16xf32, #tpu.memory_space<vmem>>, vector<1x16x16xf32>
    %176 = vector.shape_cast %175 : vector<1x16x16xf32> to vector<16x16xf32>
    %177 = vector.shape_cast %174 : vector<16x16xf32> to vector<1x16x16xf32>
    tpu.vector_store %arg15[%c0_52, %c0_53, %c0_54], %177 {strides = array<i32>} : memref<1x16x16xf32, #tpu.memory_space<vmem>>, vector<1x16x16xf32>,
    return
  }
  func.func @transform_0(%arg0: i32, %arg1: i32) -> (i32, i32, i32) {
    %c0_i32 = arith.constant 0 : i32
    %c0_i32_0 = arith.constant 0 : i32
    return %arg0, %c0_i32, %arg1 : i32, i32, i32
  }
  func.func @transform_1(%arg0: i32, %arg1: i32) -> (i32, i32, i32) {
    %c0_i32 = arith.constant 0 : i32
    %c0_i32_0 = arith.constant 0 : i32
    return %arg0, %c0_i32, %arg1 : i32, i32, i32
  }
  func.func @transform_2(%arg0: i32, %arg1: i32) -> (i32, i32, i32, i32) {
    %c0_i32 = arith.constant 0 : i32
    %c0_i32_0 = arith.constant 0 : i32
    %c0_i32_1 = arith.constant 0 : i32
    return %arg0, %c0_i32, %c0_i32_0, %arg1 : i32, i32, i32, i32
  }
  func.func @transform_3(%arg0: i32, %arg1: i32) -> (i32, i32, i32) {
    %c0_i32 = arith.constant 0 : i32
    %c0_i32_0 = arith.constant 0 : i32
    return %arg0, %c0_i32, %arg1 : i32, i32, i32
  }
  func.func @transform_4(%arg0: i32, %arg1: i32) -> (i32, i32, i32) {
    %c0_i32 = arith.constant 0 : i32
    %c0_i32_0 = arith.constant 0 : i32
    %c0_i32_1 = arith.constant 0 : i32
    return %arg0, %c0_i32, %c0_i32_0 : i32, i32, i32
  }
  func.func @transform_5(%arg0: i32, %arg1: i32) -> i32 {
    %c0_i32 = arith.constant 0 : i32
    %c0_i32_0 = arith.constant 0 : i32
    return %c0_i32 : i32
  }
  func.func @transform_6(%arg0: i32, %arg1: i32) -> (i32, i32) {
    %c0_i32 = arith.constant 0 : i32
    %c0_i32_0 = arith.constant 0 : i32
    %c0_i32_1 = arith.constant 0 : i32
    return %c0_i32, %c0_i32_0 : i32, i32
  }
  func.func @transform_7(%arg0: i32, %arg1: i32) -> (i32, i32) {
    %c0_i32 = arith.constant 0 : i32
    %c0_i32_0 = arith.constant 0 : i32
    %c0_i32_1 = arith.constant 0 : i32
    return %c0_i32, %c0_i32_0 : i32, i32
  }
  func.func @transform_8(%arg0: i32, %arg1: i32) -> (i32, i32) {
    %c0_i32 = arith.constant 0 : i32
    %c0_i32_0 = arith.constant 0 : i32
    %c0_i32_1 = arith.constant 0 : i32
    return %c0_i32, %c0_i32_0 : i32, i32
  }
  func.func @transform_9(%arg0: i32, %arg1: i32) -> (i32, i32) {
    %c0_i32 = arith.constant 0 : i32
    %c0_i32_0 = arith.constant 0 : i32
    %c0_i32_1 = arith.constant 0 : i32
    return %c0_i32, %c0_i32_0 : i32, i32
  }
  func.func @transform_10(%arg0: i32, %arg1: i32) -> (i32, i32) {
    %c0_i32 = arith.constant 0 : i32
    %c0_i32_0 = arith.constant 0 : i32
    %c0_i32_1 = arith.constant 0 : i32
    return %c0_i32, %c0_i32_0 : i32, i32
  }
  func.func @transform_11(%arg0: i32, %arg1: i32) -> (i32, i32) {
    %c0_i32 = arith.constant 0 : i32
    %c0_i32_0 = arith.constant 0 : i32
    %c0_i32_1 = arith.constant 0 : i32
    return %c0_i32, %c0_i32_0 : i32, i32
  }
  func.func @transform_12(%arg0: i32, %arg1: i32) -> (i32, i32) {
    %c0_i32 = arith.constant 0 : i32
    %c0_i32_0 = arith.constant 0 : i32
    %c0_i32_1 = arith.constant 0 : i32
    return %c0_i32, %c0_i32_0 : i32, i32
  }
  func.func @transform_13(%arg0: i32, %arg1: i32) -> (i32, i32, i32) {
    %c0_i32 = arith.constant 0 : i32
    %c0_i32_0 = arith.constant 0 : i32
    return %arg0, %c0_i32, %arg1 : i32, i32, i32
  }
}

</mosaic_0001>

<llo_original>
// kernel: molconv2_forward.3
$region0: #{molconv2_forward.3}
  #allocation0 [shape = 'u32[]', space=smem, size = 0x4, offset = 0x4, fixed_abs, tag = 'smem constant byte address 0x4 - core index']
  #allocation1 [shape = 'u32[144,128]{1,0:T(1,128)}', space=vmem, size = 0x12000, scoped, tag = 'internal scratch']
  %s0 = inlined_call_operand.vmem [shape: f32[2,16,14], index: 0, kind: input, shape index: {}, may-alias: {0,1}]
  %s1 = inlined_call_operand.vmem [shape: f32[2,16,14], index: 1, kind: input, shape index: {}, may-alias: {0,1}]
  %s2 = inlined_call_operand.vmem [shape: f32[2,16,16], index: 2, kind: output, shape index: {}]
  %s3 = sld [smem:[#allocation0]]
  $region41: #{molconv2_forward.3} parent=0
    _
  %s5 = ssub.s32 1, %s3
  %s6 = scalar_select 0, %s5, %s3
  loop: start=0, step=1, limit=4
  $region2: #{molconv2_forward.3} parent=0 // loop_pre_header
    _
  $region3: #{molconv2_forward.3} parent=0 // loop_header
    %s8 = sphi 0, %s12
    %p9 = scmp.ge.s32.totalorder %s8, 4
    %s15 = sphi 0, %s27
    %s16 = sphi 0, %s23
    %s17 = sphi 0, %s15
    %s18 = sphi 0, %s16
    %s19 = sphi 0, %s17
    %s20 = sphi 0, %s18
    %s32 = sphi 0, %s34
    %s35 = sphi 0, %s32
    %s36 = sphi 0, %s35
    %s52 = sphi 0, %s36
    %s58 = sphi 0, %s60
    %s61 = sphi 0, %s58
    %s62 = sphi 0, %s61
    %s78 = sphi 0, %s62
    %s86 = sphi 0, %s88
    %s89 = sphi 0, %s86
    %s90 = sphi 0, %s89
    %s106 = sphi 0, %s90
  $region4: #{molconv2_forward.3} parent=0 // loop_header_branch
    %11 = sbr.rel (%p9) target = $region8
  $region5: #{molconv2_forward.3} parent=0 // loop_body
    %s13 = ssub.s32 %s8, 1
    %s14 = ssub.s32 %s8, 2
    %s21 = sadd.s32 1, %s16
    %p22 = scmp.ge.s32.totalorder %s21, 1
    %s23 = scalar_select %p22, 0, %s21
    %s24 = sadd.s32 1, %s15
    %s25 = scalar_select %p22, %s24, %s15
    %p26 = scmp.ge.s32.totalorder %s25, 2
    %s27 = scalar_select %p26, 0, %s25
    %s28 = ssub.s32 %s15, %s27
    %s29 = ssub.s32 %s16, %s23
    %s30 = sor.u32 %s28, %s29
    %p31 = scmp.eq.s32.totalorder %s30, 0
    %s33 = sadd.s32 %s32, 1
    %s34 = scalar_select %p31, %s32, %s33
    %p37 = pneg %p31
    %p38 = scmp.eq.s32.totalorder %s8, 1
    %p39 = por %p37, %p38
    %p40 = scmp.ne.s32.totalorder %s32, %s35
    %p41 = scmp.eq.s32.totalorder %s8, 0
    %p42 = por %p40, %p41
    %p43 = scmp.ne.s32.totalorder %s32, %s35
    %p44 = scmp.eq.s32.totalorder %s13, 1
    %p45 = por %p43, %p44
    %p46 = scmp.ne.s32.totalorder %s35, %s36
    %p47 = scmp.eq.s32.totalorder %s13, 0
    %p48 = por %p46, %p47
    %p49 = scmp.ne.s32.totalorder %s35, %s36
    %p50 = scmp.eq.s32.totalorder %s14, 1
    %p51 = por %p49, %p50
    %p53 = scmp.ne.s32.totalorder %s36, %s52
    %p54 = scmp.eq.s32.totalorder %s14, 0
    %p55 = por %p53, %p54
    %s56 = ssub.s32 %s15, %s27
    %p57 = scmp.eq.s32.totalorder %s56, 0
    %s59 = sadd.s32 %s58, 1
    %s60 = scalar_select %p57, %s58, %s59
    %p63 = pneg %p57
    %p64 = scmp.eq.s32.totalorder %s8, 1
    %p65 = por %p63, %p64
    %p66 = scmp.ne.s32.totalorder %s58, %s61
    %p67 = scmp.eq.s32.totalorder %s8, 0
    %p68 = por %p66, %p67
    %p69 = scmp.ne.s32.totalorder %s58, %s61
    %p70 = scmp.eq.s32.totalorder %s13, 1
    %p71 = por %p69, %p70
    %p72 = scmp.ne.s32.totalorder %s61, %s62
    %p73 = scmp.eq.s32.totalorder %s13, 0
    %p74 = por %p72, %p73
    %p75 = scmp.ne.s32.totalorder %s61, %s62
    %p76 = scmp.eq.s32.totalorder %s14, 1
    %p77 = por %p75, %p76
    %p79 = scmp.ne.s32.totalorder %s62, %s78
    %p80 = scmp.eq.s32.totalorder %s14, 0
    %p81 = por %p79, %p80
    %s82 = ssub.s32 %s15, %s27
    %s83 = ssub.s32 %s16, %s23
    %s84 = sor.u32 %s82, %s83
    %p85 = scmp.eq.s32.totalorder %s84, 0
    %s87 = sadd.s32 %s86, 1
    %s88 = scalar_select %p85, %s86, %s87
    %p91 = pneg %p85
    %p92 = scmp.eq.s32.totalorder %s8, 1
    %p93 = por %p91, %p92
    %p94 = scmp.ne.s32.totalorder %s86, %s89
    %p95 = scmp.eq.s32.totalorder %s8, 0
    %p96 = por %p94, %p95
    %p97 = scmp.ne.s32.totalorder %s86, %s89
    %p98 = scmp.eq.s32.totalorder %s13, 1
    %p99 = por %p97, %p98
    %p100 = scmp.ne.s32.totalorder %s89, %s90
    %p101 = scmp.eq.s32.totalorder %s13, 0
    %p102 = por %p100, %p101
    %p103 = scmp.ne.s32.totalorder %s89, %s90
    %p104 = scmp.eq.s32.totalorder %s14, 1
    %p105 = por %p103, %p104
    %p107 = scmp.ne.s32.totalorder %s90, %s106
    %p108 = scmp.eq.s32.totalorder %s14, 0
    %p109 = por %p107, %p108
    %p110 = scmp.le.s32.totalorder 1, %s8
    %p111 = scmp.lt.s32.totalorder %s8, 3
    %p112 = pnand %p110, %p111
    %p113 = pneg %p112
    // Predicated region
    $region9: #{molconv2_forward.3} parent=5 // pred_check
      _
    $region10: #{molconv2_forward.3} parent=5 // pred_check_branch
      %115 = sbr.rel (%p112) target = $region12
    $region11: #{molconv2_forward.3} parent=5 // pred_region
      %s116 = ssub.s32 %s8, 1
    $region12: #{molconv2_forward.3} parent=5 // pred_fallthru
      _
    %p117 = scmp.lt.s32.totalorder %s8, 2
    // Predicated region
    $region13: #{molconv2_forward.3} parent=5 // pred_check
      %p118 = pneg %p117
    $region14: #{molconv2_forward.3} parent=5 // pred_check_branch
      %120 = sbr.rel (%p118) target = $region16
    $region15: #{molconv2_forward.3} parent=5 // pred_region
      // Predicated region
      $region17: #{molconv2_forward.3} parent=15 // pred_check
        %p121 = pneg %p42
      $region18: #{molconv2_forward.3} parent=15 // pred_check_branch
        %123 = sbr.rel (%p121) target = $region20
      $region19: #{molconv2_forward.3} parent=15 // pred_region
        %s124 = smul.u32 2, %s16
        %p125 = scmp.lt.s32.totalorder %s15, 1
        %s126 = scalar_select %p125, %s15, 1
        %p127 = scmp.lt.s32.totalorder %s124, 1
        %s128 = scalar_select %p127, %s124, 1
        %s129 = smul.addr %s126, 2
        %s130 = sadd.s32 %s128, %s129
        %s131 = smul.addr %s130, 8
        %s132 = scalar_lea.vmem %s0, %s131
        %s133 = smul.u32 2, %s16
      $region20: #{molconv2_forward.3} parent=15 // pred_fallthru
        _
      // Predicated region
      $region21: #{molconv2_forward.3} parent=15 // pred_check
        %p134 = pneg %p68
      $region22: #{molconv2_forward.3} parent=15 // pred_check_branch
        %136 = sbr.rel (%p134) target = $region24
      $region23: #{molconv2_forward.3} parent=15 // pred_region
        %p137 = scmp.lt.s32.totalorder %s15, 1
        %s138 = scalar_select %p137, %s15, 1
        %s139 = smul.addr %s138, 2
        %s140 = smul.addr %s139, 8
        %s141 = scalar_lea.vmem %s1, %s140
      $region24: #{molconv2_forward.3} parent=15 // pred_fallthru
        _
    $region16: #{molconv2_forward.3} parent=5 // pred_fallthru
      _
    %p142 = scmp.le.s32.totalorder 1, %s8
    %p143 = scmp.lt.s32.totalorder %s8, 3
    %p144 = pnand %p142, %p143
    %p145 = pneg %p144
    // Predicated region
    $region25: #{molconv2_forward.3} parent=5 // pred_check
      _
    $region26: #{molconv2_forward.3} parent=5 // pred_check_branch
      %147 = sbr.rel (%p144) target = $region28
    $region27: #{molconv2_forward.3} parent=5 // pred_region
      %s148 = ssub.s32 %s8, 1
      %s149 = smul.u32 2, %s18
      %p150 = scmp.lt.s32.totalorder %s17, 1
      %s151 = scalar_select %p150, %s17, 1
      %p152 = scmp.lt.s32.totalorder %s149, 1
      %s153 = scalar_select %p152, %s149, 1
      %s154 = smul.addr %s151, 2
      %s155 = sadd.s32 %s153, %s154
      %s156 = smul.addr %s155, 8
      %s157 = scalar_lea.vmem %s0, %s156
      %p158 = pneg %p48
      %p159 = pneg %p45
      %p160 = scmp.lt.s32.totalorder %s17, 1
      %s161 = scalar_select %p160, %s17, 1
      %s162 = smul.addr %s161, 2
      %s163 = smul.addr %s162, 8
      %s164 = scalar_lea.vmem %s1, %s163
      %p165 = pneg %p74
      %p166 = pneg %p71
      %p167 = pneg %p102
      %p168 = pneg %p99
      %s169 = smul.u32 2, %s18
      %p170 = scmp.lt.s32.totalorder %s17, 1
      %s171 = scalar_select %p170, %s17, 1
      %p172 = scmp.lt.s32.totalorder %s169, 1
      %s173 = scalar_select %p172, %s169, 1
      %s174 = smul.addr %s171, 2
      %s175 = sadd.s32 %s173, %s174
      %s176 = smul.addr %s175, 8
      %s177 = scalar_lea.vmem %s2, %s176
      %s178 = smul.u32 2, %s18
      %p179 = scmp.lt.s32.totalorder %s17, 1
      %s180 = scalar_select %p179, %s17, 1
      %p181 = scmp.lt.s32.totalorder %s178, 1
      %s182 = scalar_select %p181, %s178, 1
      %s183 = smul.addr %s180, 2
      %s184 = sadd.s32 %s182, %s183
      %s185 = smul.addr %s184, 8
      %s186 = scalar_lea.vmem %s0, %s185
      %s187 = smul.u32 2, %s18
      %p188 = scmp.lt.s32.totalorder %s17, 1
      %s189 = scalar_select %p188, %s17, 1
      %s190 = smul.addr %s189, 2
      %s191 = smul.addr %s190, 8
      %s192 = scalar_lea.vmem %s1, %s191
      %s193 = smul.u32 2, %s18
      %p194 = scmp.lt.s32.totalorder %s17, 1
      %s195 = scalar_select %p194, %s17, 1
      %p196 = scmp.lt.s32.totalorder %s193, 1
      %s197 = scalar_select %p196, %s193, 1
      %s198 = smul.addr %s195, 2
      %s199 = sadd.s32 %s197, %s198
      %s200 = smul.addr %s199, 8
      %s201 = scalar_lea.vmem %s2, %s200
      %s202 = smul.u32 2, %s18
      %v203 = vld [vmem:[%s186] sm:$0xff]
      %v204 = vld [vmem:[%s186 + $0x8] sm:$0xff]
      %v205 = vld [vmem:[%s192] sm:$0xff]
      %v206 = vld [vmem:[%s192 + $0x8] sm:$0xff]
      %v207 = vmul.f32 %v203, %v203
      %v208 = vmul.f32 %v204, %v204
      %vm209 = vcmask 113664
      %v210 = vsel %vm209, %v207, 0.0
      %211 = vadd.xlane.f32.xlu0 %v210
      %v212 = vpop.xlane.xlu0 %211
      %v213 = vsel %vm209, %v208, 0.0
      %214 = vadd.xlane.f32.xlu0 %v213
      %v215 = vpop.xlane.xlu0 %214
      %v216 = vmul.f32 %v205, %v205
      %v217 = vmul.f32 %v206, %v206
      %v218 = vsel %vm209, %v216, 0.0
      %219 = vadd.xlane.f32.xlu0 %v218
      %v220 = vpop.xlane.xlu0 %219
      %v221 = vsel %vm209, %v217, 0.0
      %222 = vadd.xlane.f32.xlu0 %v221
      %v223 = vpop.xlane.xlu0 %222
      %v224 = vmul.f32 %v203, 2.0
      %v225 = vmul.f32 %v204, 2.0
      %v226 = vsel %vm209, %v224, 1.0
      %v227 = vsel %vm209, %v225, 1.0
      %v228 = vsub.f32 0.0, %v220
      %v229 = vsub.f32 0.0, %v223
      %v230 = vsel %vm209, %v205, %v228
      %v231 = vsel %vm209, %v206, %v229
      %vm232 = vcmask 121856
      %v234 = vsel %vm232, %v226, 0
      %v237 = vsel %vm232, %v227, 0
      %v240 = vsel %vm232, %v230, 0
      %v243 = vsel %vm232, %v231, 0
      %245 = vmatprep.subr.mxu0 0.0
      %246 = vmatpush1.xpose.msra.mxu0 %v240
      %247 = vmatprep.subr.mxu0 0.0
      %248 = vmatpush1.xpose.msra.mxu0 %v243
      %249 = vmatprep.subr.mxu0 0.0
      %250 = vmatpush1.xpose.msra.mxu0 0.0
      %251 = vmatprep.subr.mxu0 0.0
      %252 = vmatpush1.xpose.msra.mxu0 0.0
      %253 = vmatprep.subr.mxu0 0.0
      %254 = vmatpush1.xpose.msra.mxu0 0.0
      %255 = vmatprep.subr.mxu0 0.0
      %256 = vmatpush1.xpose.msra.mxu0 0.0
      %257 = vmatprep.subr.mxu0 0.0
      %258 = vmatpush1.xpose.msra.mxu0 0.0
      %259 = vmatprep.subr.mxu0 0.0
      %260 = vmatpush1.xpose.msra.mxu0 0.0
      %261 = vmatprep.subr.mxu0 0.0
      %262 = vmatpush1.xpose.msra.mxu0 0.0
      %263 = vmatprep.subr.mxu0 0.0
      %264 = vmatpush1.xpose.msra.mxu0 0.0
      %265 = vmatprep.subr.mxu0 0.0
      %266 = vmatpush1.xpose.msra.mxu0 0.0
      %267 = vmatprep.subr.mxu0 0.0
      %268 = vmatpush1.xpose.msra.mxu0 0.0
      %269 = vmatprep.subr.mxu0 0.0
      %270 = vmatpush1.xpose.msra.mxu0 0.0
      %271 = vmatprep.subr.mxu0 0.0
      %272 = vmatpush1.xpose.msra.mxu0 0.0
      %273 = vmatprep.subr.mxu0 0.0
      %274 = vmatpush1.xpose.msra.mxu0 0.0
      %275 = vmatprep.subr.mxu0 0.0
      %276 = vmatpush1.xpose.msra.mxu0 0.0
      %277 = vmatprep.subr.mxu0 0.0
      %278 = vmatpush1.xpose.msra.mxu0 0.0
      %279 = vmatprep.subr.mxu0 0.0
      %280 = vmatpush1.xpose.msra.mxu0 0.0
      %281 = vmatprep.subr.mxu0 0.0
      %282 = vmatpush1.xpose.msra.mxu0 0.0
      %283 = vmatprep.subr.mxu0 0.0
      %284 = vmatpush1.xpose.msra.mxu0 0.0
      %285 = vmatprep.subr.mxu0 0.0
      %286 = vmatpush1.xpose.msra.mxu0 0.0
      %287 = vmatprep.subr.mxu0 0.0
      %288 = vmatpush1.xpose.msra.mxu0 0.0
      %289 = vmatprep.subr.mxu0 0.0
      %290 = vmatpush1.xpose.msra.mxu0 0.0
      %291 = vmatprep.subr.mxu0 0.0
      %292 = vmatpush1.xpose.msra.mxu0 0.0
      %293 = vmatprep.subr.mxu0 0.0
      %294 = vmatpush1.xpose.msra.mxu0 0.0
      %295 = vmatprep.subr.mxu0 0.0
      %296 = vmatpush1.xpose.msra.mxu0 0.0
      %297 = vmatprep.subr.mxu0 0.0
      %298 = vmatpush1.xpose.msra.mxu0 0.0
      %299 = vmatprep.subr.mxu0 0.0
      %300 = vmatpush1.xpose.msra.mxu0 0.0
      %301 = vmatprep.subr.mxu0 0.0
      %302 = vmatpush1.xpose.msra.mxu0 0.0
      %303 = vmatprep.subr.mxu0 0.0
      %304 = vmatpush1.xpose.msra.mxu0 0.0
      %305 = vmatprep.subr.mxu0 0.0
      %306 = vmatpush1.xpose.msra.mxu0 0.0
      %307 = vmatprep.subr.mxu0 0.0
      %308 = vmatpush1.xpose.msra.mxu0 0.0
      %309 = vmatprep.mubr.f32.mxu0 0.0
      %310 = vmatmul.mubr.f32.gmra.mrb[0].mxu0 %v234
      %v311 = vpop.f32.mrb[0].mxu0
      %v312 = vadd.f32 0.0, %v311
      %v313 = vpop.f32.mrb[0].mxu0
      %314 = vmatprep.mubr.f32.mxu0 0.0
      %315 = vmatmul.mubr.f32.gmra.mrb[0].mxu0 %v237
      %v316 = vpop.f32.mrb[0].mxu0
      %v317 = vadd.f32 0.0, %v316
      %v318 = vpop.f32.mrb[0].mxu0
      %319 = vdwg.mxu0
      %v320 = vsub.f32 %v312, %v212
      %v321 = vsub.f32 %v317, %v215
      %vm322 = vcmask 130048
      %323 = vst.msk [vmem:[%s201] sm:$0xff] %vm322, %v320
      %324 = vst.msk [vmem:[%s201 + $0x8] sm:$0xff] %vm322, %v321
      %s325 = smul.u32 2, %s18
      %p326 = scmp.lt.s32.totalorder %s17, 1
      %s327 = scalar_select %p326, %s17, 1
      %p328 = scmp.lt.s32.totalorder %s325, 1
      %s329 = scalar_select %p328, %s325, 1
      %s330 = smul.addr %s327, 2
      %s331 = sadd.s32 %s329, %s330
      %s332 = smul.addr %s331, 8
      %s333 = scalar_lea.vmem %s2, %s332
      // Predicated region
      $region29: #{molconv2_forward.3} parent=27 // pred_check
        %p334 = pneg %p99
      $region30: #{molconv2_forward.3} parent=27 // pred_check_branch
        %336 = sbr.rel (%p334) target = $region32
      $region31: #{molconv2_forward.3} parent=27 // pred_region
        %s337 = smul.u32 2, %s18
      $region32: #{molconv2_forward.3} parent=27 // pred_fallthru
        _
    $region28: #{molconv2_forward.3} parent=5 // pred_fallthru
      _
    %p338 = scmp.le.s32.totalorder 2, %s8
    // Predicated region
    $region33: #{molconv2_forward.3} parent=5 // pred_check
      %p339 = pneg %p338
    $region34: #{molconv2_forward.3} parent=5 // pred_check_branch
      %341 = sbr.rel (%p339) target = $region36
    $region35: #{molconv2_forward.3} parent=5 // pred_region
      %s342 = ssub.s32 %s8, 2
      // Predicated region
      $region37: #{molconv2_forward.3} parent=35 // pred_check
        %p343 = pneg %p105
      $region38: #{molconv2_forward.3} parent=35 // pred_check_branch
        %345 = sbr.rel (%p343) target = $region40
      $region39: #{molconv2_forward.3} parent=35 // pred_region
        %s346 = smul.u32 2, %s20
        %p347 = scmp.lt.s32.totalorder %s19, 1
        %s348 = scalar_select %p347, %s19, 1
        %p349 = scmp.lt.s32.totalorder %s346, 1
        %s350 = scalar_select %p349, %s346, 1
        %s351 = smul.addr %s348, 2
        %s352 = sadd.s32 %s350, %s351
        %s353 = smul.addr %s352, 8
        %s354 = scalar_lea.vmem %s2, %s353
      $region40: #{molconv2_forward.3} parent=35 // pred_fallthru
        _
    $region36: #{molconv2_forward.3} parent=5 // pred_fallthru
      _
  $region6: #{molconv2_forward.3} parent=0 // loop_footer
    %s12 = sadd.s32 1, %s8
  $region7: #{molconv2_forward.3} parent=0 // loop_footer_branch
    %7 = sbr.rel target = $region3
  $region8: #{molconv2_forward.3} parent=0 // loop_exit
    _

// kernel: molconv2_forward.4
$region0: #{molconv2_forward.4}
  #allocation0 [shape = 'u32[]', space=smem, size = 0x4, offset = 0x4, fixed_abs, tag = 'smem constant byte address 0x4 - core index']
  #allocation1 [shape = 'u32[144,128]{1,0:T(1,128)}', space=vmem, size = 0x12000, scoped, tag = 'internal scratch']
  %s0 = inlined_call_operand.vmem [shape: f32[2,4,14,16], index: 0, kind: input, shape index: {}]
  %s1 = inlined_call_operand.vmem [shape: f32[2,4,16], index: 1, kind: output, shape index: {0}]
  %s2 = inlined_call_operand.vmem [shape: f32[2,4,4], index: 2, kind: output, shape index: {1}]
  %3 = xla_tuple %s1, %s2
  %s4 = sld [smem:[#allocation0]]
  $region45: #{molconv2_forward.4} parent=0
    _
  %s6 = ssub.s32 1, %s4
  %s7 = scalar_select 0, %s6, %s4
  loop: start=0, step=1, limit=4
  $region2: #{molconv2_forward.4} parent=0 // loop_pre_header
    _
  $region3: #{molconv2_forward.4} parent=0 // loop_header
    %s9 = sphi 0, %s13
    %p10 = scmp.ge.s32.totalorder %s9, 4
    %s19 = sphi 0, %s21
    %s22 = sphi 0, %s19
    %s23 = sphi 0, %s22
    %s39 = sphi 0, %s23
    %s45 = sphi 0, %s47
    %s48 = sphi 0, %s45
    %s49 = sphi 0, %s48
    %s65 = sphi 0, %s49
    %s71 = sphi 0, %s73
    %s74 = sphi 0, %s71
    %s75 = sphi 0, %s74
    %s91 = sphi 0, %s75
  $region4: #{molconv2_forward.4} parent=0 // loop_header_branch
    %12 = sbr.rel (%p10) target = $region8
  $region5: #{molconv2_forward.4} parent=0 // loop_body
    %s14 = ssub.s32 %s9, 1
    %s15 = ssub.s32 %s9, 2
    %s16 = sadd.s32 %s9, 1
    %s17 = ssub.s32 %s9, %s16
    %p18 = scmp.eq.s32.totalorder %s17, 0
    %s20 = sadd.s32 %s19, 1
    %s21 = scalar_select %p18, %s19, %s20
    %p24 = pneg %p18
    %p25 = scmp.eq.s32.totalorder %s9, 1
    %p26 = por %p24, %p25
    %p27 = scmp.ne.s32.totalorder %s19, %s22
    %p28 = scmp.eq.s32.totalorder %s9, 0
    %p29 = por %p27, %p28
    %p30 = scmp.ne.s32.totalorder %s19, %s22
    %p31 = scmp.eq.s32.totalorder %s14, 1
    %p32 = por %p30, %p31
    %p33 = scmp.ne.s32.totalorder %s22, %s23
    %p34 = scmp.eq.s32.totalorder %s14, 0
    %p35 = por %p33, %p34
    %p36 = scmp.ne.s32.totalorder %s22, %s23
    %p37 = scmp.eq.s32.totalorder %s15, 1
    %p38 = por %p36, %p37
    %p40 = scmp.ne.s32.totalorder %s23, %s39
    %p41 = scmp.eq.s32.totalorder %s15, 0
    %p42 = por %p40, %p41
    %s43 = ssub.s32 %s9, %s16
    %p44 = scmp.eq.s32.totalorder %s43, 0
    %s46 = sadd.s32 %s45, 1
    %s47 = scalar_select %p44, %s45, %s46
    %p50 = pneg %p44
    %p51 = scmp.eq.s32.totalorder %s9, 1
    %p52 = por %p50, %p51
    %p53 = scmp.ne.s32.totalorder %s45, %s48
    %p54 = scmp.eq.s32.totalorder %s9, 0
    %p55 = por %p53, %p54
    %p56 = scmp.ne.s32.totalorder %s45, %s48
    %p57 = scmp.eq.s32.totalorder %s14, 1
    %p58 = por %p56, %p57
    %p59 = scmp.ne.s32.totalorder %s48, %s49
    %p60 = scmp.eq.s32.totalorder %s14, 0
    %p61 = por %p59, %p60
    %p62 = scmp.ne.s32.totalorder %s48, %s49
    %p63 = scmp.eq.s32.totalorder %s15, 1
    %p64 = por %p62, %p63
    %p66 = scmp.ne.s32.totalorder %s49, %s65
    %p67 = scmp.eq.s32.totalorder %s15, 0
    %p68 = por %p66, %p67
    %s69 = ssub.s32 %s9, %s16
    %p70 = scmp.eq.s32.totalorder %s69, 0
    %s72 = sadd.s32 %s71, 1
    %s73 = scalar_select %p70, %s71, %s72
    %p76 = pneg %p70
    %p77 = scmp.eq.s32.totalorder %s9, 1
    %p78 = por %p76, %p77
    %p79 = scmp.ne.s32.totalorder %s71, %s74
    %p80 = scmp.eq.s32.totalorder %s9, 0
    %p81 = por %p79, %p80
    %p82 = scmp.ne.s32.totalorder %s71, %s74
    %p83 = scmp.eq.s32.totalorder %s14, 1
    %p84 = por %p82, %p83
    %p85 = scmp.ne.s32.totalorder %s74, %s75
    %p86 = scmp.eq.s32.totalorder %s14, 0
    %p87 = por %p85, %p86
    %p88 = scmp.ne.s32.totalorder %s74, %s75
    %p89 = scmp.eq.s32.totalorder %s15, 1
    %p90 = por %p88, %p89
    %p92 = scmp.ne.s32.totalorder %s75, %s91
    %p93 = scmp.eq.s32.totalorder %s15, 0
    %p94 = por %p92, %p93
    %p95 = scmp.le.s32.totalorder 1, %s9
    %p96 = scmp.lt.s32.totalorder %s9, 3
    %p97 = pnand %p95, %p96
    %p98 = pneg %p97
    // Predicated region
    $region9: #{molconv2_forward.4} parent=5 // pred_check
      _
    $region10: #{molconv2_forward.4} parent=5 // pred_check_branch
      %100 = sbr.rel (%p97) target = $region12
    $region11: #{molconv2_forward.4} parent=5 // pred_region
      %s101 = ssub.s32 %s9, 1
    $region12: #{molconv2_forward.4} parent=5 // pred_fallthru
      _
    %p102 = scmp.lt.s32.totalorder %s9, 2
    // Predicated region
    $region13: #{molconv2_forward.4} parent=5 // pred_check
      %p103 = pneg %p102
    $region14: #{molconv2_forward.4} parent=5 // pred_check_branch
      %105 = sbr.rel (%p103) target = $region16
    $region15: #{molconv2_forward.4} parent=5 // pred_region
      // Predicated region
      $region17: #{molconv2_forward.4} parent=15 // pred_check
        %p106 = pneg %p29
      $region18: #{molconv2_forward.4} parent=15 // pred_check_branch
        %108 = sbr.rel (%p106) target = $region20
      $region19: #{molconv2_forward.4} parent=15 // pred_region
        %p109 = scmp.lt.s32.totalorder %s9, 1
        %s110 = scalar_select %p109, %s9, 1
        %s111 = smul.addr %s110, 8
        %s112 = smul.addr %s111, 8
        %s113 = scalar_lea.vmem %s0, %s112
      $region20: #{molconv2_forward.4} parent=15 // pred_fallthru
        _
    $region16: #{molconv2_forward.4} parent=5 // pred_fallthru
      _
    %p114 = scmp.le.s32.totalorder 1, %s9
    %p115 = scmp.lt.s32.totalorder %s9, 3
    %p116 = pnand %p114, %p115
    %p117 = pneg %p116
    // Predicated region
    $region21: #{molconv2_forward.4} parent=5 // pred_check
      _
    $region22: #{molconv2_forward.4} parent=5 // pred_check_branch
      %119 = sbr.rel (%p116) target = $region24
    $region23: #{molconv2_forward.4} parent=5 // pred_region
      %s120 = ssub.s32 %s9, 1
      %p121 = scmp.lt.s32.totalorder %s14, 1
      %s122 = scalar_select %p121, %s14, 1
      %s123 = smul.addr %s122, 8
      %s124 = smul.addr %s123, 8
      %s125 = scalar_lea.vmem %s0, %s124
      %p126 = pneg %p35
      %p127 = pneg %p32
      %p128 = pneg %p61
      %p129 = pneg %p58
      %p130 = scmp.lt.s32.totalorder %s14, 1
      %s131 = scalar_select %p130, %s14, 1
      %s132 = smul.addr %s131, 4
      %s133 = scalar_lea.vmem %s1, %s132
      %p134 = pneg %p87
      %p135 = pneg %p84
      %p136 = scmp.lt.s32.totalorder %s14, 1
      %s137 = scalar_select %p136, %s14, 1
      %s138 = smul.addr %s137, 4
      %s139 = scalar_lea.vmem %s2, %s138
      %p140 = scmp.lt.s32.totalorder %s14, 1
      %s141 = scalar_select %p140, %s14, 1
      %s142 = smul.addr %s141, 8
      %s143 = smul.addr %s142, 8
      %s144 = scalar_lea.vmem %s0, %s143
      %p145 = scmp.lt.s32.totalorder %s14, 1
      %s146 = scalar_select %p145, %s14, 1
      %s147 = smul.addr %s146, 4
      %s148 = scalar_lea.vmem %s1, %s147
      %p149 = scmp.lt.s32.totalorder %s14, 1
      %s150 = scalar_select %p149, %s14, 1
      %s151 = smul.addr %s150, 4
      %s152 = scalar_lea.vmem %s2, %s151
      %v153 = vld [vmem:[%s144] sm:$0xff]
      %v154 = vld [vmem:[%s144 + $0x8] sm:$0x3f]
      %v155 = vld [vmem:[%s144 + $0x10] sm:$0xff]
      %v156 = vld [vmem:[%s144 + $0x18] sm:$0x3f]
      %v157 = vld [vmem:[%s144 + $0x20] sm:$0xff]
      %v158 = vld [vmem:[%s144 + $0x28] sm:$0x3f]
      %v159 = vld [vmem:[%s144 + $0x30] sm:$0xff]
      %v160 = vld [vmem:[%s144 + $0x38] sm:$0x3f]
      %v161 = vmul.f32 %v153, %v153
      %v162 = vmul.f32 %v154, %v154
      %v163 = vmul.f32 %v155, %v153
      %v164 = vmul.f32 %v156, %v154
      %v165 = vmul.f32 %v157, %v153
      %v166 = vmul.f32 %v158, %v154
      %v167 = vmul.f32 %v159, %v153
      %v168 = vmul.f32 %v160, %v154
      %vm169 = vcmask 130048
      %v170 = vsel %vm169, %v161, 0.0
      %vm171 = vcmask 128000
      %v172 = vsel %vm171, %v162, 0.0
      %v173 = vadd.f32 %v170, %v172
      %v174 = vrot.slane %v173, 4
      %v175 = vadd.f32 %v173, %v174
      %v176 = vrot.slane %v175, 2
      %v177 = vadd.f32 %v175, %v176
      %v178 = vrot.slane %v177, 1
      %v179 = vadd.f32 %v177, %v178
      %v180 = vsel %vm169, %v163, 0.0
      %v181 = vsel %vm171, %v164, 0.0
      %v182 = vadd.f32 %v180, %v181
      %v183 = vrot.slane %v182, 4
      %v184 = vadd.f32 %v182, %v183
      %v185 = vrot.slane %v184, 2
      %v186 = vadd.f32 %v184, %v185
      %v187 = vrot.slane %v186, 1
      %v188 = vadd.f32 %v186, %v187
      %v189 = vsel %vm169, %v165, 0.0
      %v190 = vsel %vm171, %v166, 0.0
      %v191 = vadd.f32 %v189, %v190
      %v192 = vrot.slane %v191, 4
      %v193 = vadd.f32 %v191, %v192
      %v194 = vrot.slane %v193, 2
      %v195 = vadd.f32 %v193, %v194
      %v196 = vrot.slane %v195, 1
      %v197 = vadd.f32 %v195, %v196
      %v198 = vsel %vm169, %v167, 0.0
      %v199 = vsel %vm171, %v168, 0.0
      %v200 = vadd.f32 %v198, %v199
      %v201 = vrot.slane %v200, 4
      %v202 = vadd.f32 %v200, %v201
      %v203 = vrot.slane %v202, 2
      %v204 = vadd.f32 %v202, %v203
      %v205 = vrot.slane %v204, 1
      %v206 = vadd.f32 %v204, %v205
      %v207 = vmul.f32 %v179, %v179
      %v208 = vmul.f32 %v188, %v188
      %v209 = vmul.f32 %v197, %v197
      %v210 = vmul.f32 %v206, %v206
      %vm215 = vcmask 1041409
      %v216 = vsel %vm215, %v208, %v207
      %vm217 = vcmask 1042434
      %v218 = vsel %vm217, %v209, %v216
      %vm219 = vcmask 1043459
      %v220 = vsel %vm219, %v210, %v218
      %v221 = vsel %vm169, %v220, 0
      %223 = vmatprep.subr.mxu0 0.0
      %224 = vmatpush1.xpose.msra.mxu0 %v221
      %225 = vmatprep.subr.mxu0 0.0
      %226 = vmatpush1.xpose.msra.mxu0 0.0
      %227 = vmatprep.subr.mxu0 0.0
      %228 = vmatpush1.xpose.msra.mxu0 0.0
      %229 = vmatprep.subr.mxu0 0.0
      %230 = vmatpush1.xpose.msra.mxu0 0.0
      %231 = vmatprep.subr.mxu0 0.0
      %232 = vmatpush1.xpose.msra.mxu0 0.0
      %233 = vmatprep.subr.mxu0 0.0
      %234 = vmatpush1.xpose.msra.mxu0 0.0
      %235 = vmatprep.subr.mxu0 0.0
      %236 = vmatpush1.xpose.msra.mxu0 0.0
      %237 = vmatprep.subr.mxu0 0.0
      %238 = vmatpush1.xpose.msra.mxu0 0.0
      %239 = vmatprep.subr.mxu0 0.0
      %240 = vmatpush1.xpose.msra.mxu0 0.0
      %241 = vmatprep.subr.mxu0 0.0
      %242 = vmatpush1.xpose.msra.mxu0 0.0
      %243 = vmatprep.subr.mxu0 0.0
      %244 = vmatpush1.xpose.msra.mxu0 0.0
      %245 = vmatprep.subr.mxu0 0.0
      %246 = vmatpush1.xpose.msra.mxu0 0.0
      %247 = vmatprep.subr.mxu0 0.0
      %248 = vmatpush1.xpose.msra.mxu0 0.0
      %249 = vmatprep.subr.mxu0 0.0
      %250 = vmatpush1.xpose.msra.mxu0 0.0
      %251 = vmatprep.subr.mxu0 0.0
      %252 = vmatpush1.xpose.msra.mxu0 0.0
      %253 = vmatprep.subr.mxu0 0.0
      %254 = vmatpush1.xpose.msra.mxu0 0.0
      %255 = vmatprep.subr.mxu0 0.0
      %256 = vmatpush1.xpose.msra.mxu0 0.0
      %257 = vmatprep.subr.mxu0 0.0
      %258 = vmatpush1.xpose.msra.mxu0 0.0
      %259 = vmatprep.subr.mxu0 0.0
      %260 = vmatpush1.xpose.msra.mxu0 0.0
      %261 = vmatprep.subr.mxu0 0.0
      %262 = vmatpush1.xpose.msra.mxu0 0.0
      %263 = vmatprep.subr.mxu0 0.0
      %264 = vmatpush1.xpose.msra.mxu0 0.0
      %265 = vmatprep.subr.mxu0 0.0
      %266 = vmatpush1.xpose.msra.mxu0 0.0
      %267 = vmatprep.subr.mxu0 0.0
      %268 = vmatpush1.xpose.msra.mxu0 0.0
      %269 = vmatprep.subr.mxu0 0.0
      %270 = vmatpush1.xpose.msra.mxu0 0.0
      %271 = vmatprep.subr.mxu0 0.0
      %272 = vmatpush1.xpose.msra.mxu0 0.0
      %273 = vmatprep.subr.mxu0 0.0
      %274 = vmatpush1.xpose.msra.mxu0 0.0
      %275 = vmatprep.subr.mxu0 0.0
      %276 = vmatpush1.xpose.msra.mxu0 0.0
      %277 = vmatprep.subr.mxu0 0.0
      %278 = vmatpush1.xpose.msra.mxu0 0.0
      %279 = vmatprep.subr.mxu0 0.0
      %280 = vmatpush1.xpose.msra.mxu0 0.0
      %281 = vmatprep.subr.mxu0 0.0
      %282 = vmatpush1.xpose.msra.mxu0 0.0
      %283 = vmatprep.subr.mxu0 0.0
      %284 = vmatpush1.xpose.msra.mxu0 0.0
      %285 = vmatprep.subr.mxu0 0.0
      %286 = vmatpush1.xpose.msra.mxu0 0.0
      %287 = vmatprep.mubr.f32.mxu0 0.0
      %288 = vmatmul.mubr.f32.gmra.mrb[0].mxu0 %v221
      %v289 = vpop.f32.mrb[0].mxu0
      %v290 = vadd.f32 0.0, %v289
      %v291 = vpop.f32.mrb[0].mxu0
      %292 = vdwg.mxu0
      %v297 = vsel %vm215, %v188, %v179
      %v298 = vsel %vm217, %v197, %v297
      %v299 = vsel %vm219, %v206, %v298
      %vm301 = vcmask 125952
      %302 = vst.msk [vmem:[%s148] sm:$0xf] %vm301, %v299
      %v303 = vrsqrt.pop %v290
      %v304 = vmul.f32 %v290, %v303
      %vm305 = vcmp.eq.f32.partialorder %v290, inf
      %v306 = vsel %vm305, %v290, %v304
      %vm307 = vcmp.eq.f32.partialorder %v290, 0.0
      %v308 = vand.u32 %v290, 2147483648
      %v309 = vsel %vm307, %v308, %v306
      %v310 = vmax.f32 %v309, 1e-12
      %v311 = vrcp.pop %v310
      %v312 = vmul.f32 1.0, %v311
      %vm313 = vcmask 27648
      %314 = vst.msk [vmem:[%s152] sm:$0xf] %vm313, %v312
      %p315 = scmp.lt.s32.totalorder %s14, 1
      %s316 = scalar_select %p315, %s14, 1
      %s317 = smul.addr %s316, 4
      %s318 = scalar_lea.vmem %s1, %s317
      %p319 = scmp.lt.s32.totalorder %s14, 1
      %s320 = scalar_select %p319, %s14, 1
      %s321 = smul.addr %s320, 4
      %s322 = scalar_lea.vmem %s2, %s321
      // Predicated region
      $region25: #{molconv2_forward.4} parent=23 // pred_check
        %p323 = pneg %p58
      $region26: #{molconv2_forward.4} parent=23 // pred_check_branch
        %325 = sbr.rel (%p323) target = $region28
      $region27: #{molconv2_forward.4} parent=23 // pred_region
        _
      $region28: #{molconv2_forward.4} parent=23 // pred_fallthru
        _
      // Predicated region
      $region29: #{molconv2_forward.4} parent=23 // pred_check
        %p326 = pneg %p84
      $region30: #{molconv2_forward.4} parent=23 // pred_check_branch
        %328 = sbr.rel (%p326) target = $region32
      $region31: #{molconv2_forward.4} parent=23 // pred_region
        _
      $region32: #{molconv2_forward.4} parent=23 // pred_fallthru
        _
    $region24: #{molconv2_forward.4} parent=5 // pred_fallthru
      _
    %p329 = scmp.le.s32.totalorder 2, %s9
    // Predicated region
    $region33: #{molconv2_forward.4} parent=5 // pred_check
      %p330 = pneg %p329
    $region34: #{molconv2_forward.4} parent=5 // pred_check_branch
      %332 = sbr.rel (%p330) target = $region36
    $region35: #{molconv2_forward.4} parent=5 // pred_region
      %s333 = ssub.s32 %s9, 2
      // Predicated region
      $region37: #{molconv2_forward.4} parent=35 // pred_check
        %p334 = pneg %p64
      $region38: #{molconv2_forward.4} parent=35 // pred_check_branch
        %336 = sbr.rel (%p334) target = $region40
      $region39: #{molconv2_forward.4} parent=35 // pred_region
        %p337 = scmp.lt.s32.totalorder %s15, 1
        %s338 = scalar_select %p337, %s15, 1
        %s339 = smul.addr %s338, 4
        %s340 = scalar_lea.vmem %s1, %s339
      $region40: #{molconv2_forward.4} parent=35 // pred_fallthru
        _
      // Predicated region
      $region41: #{molconv2_forward.4} parent=35 // pred_check
        %p341 = pneg %p90
      $region42: #{molconv2_forward.4} parent=35 // pred_check_branch
        %343 = sbr.rel (%p341) target = $region44
      $region43: #{molconv2_forward.4} parent=35 // pred_region
        %p344 = scmp.lt.s32.totalorder %s15, 1
        %s345 = scalar_select %p344, %s15, 1
        %s346 = smul.addr %s345, 4
        %s347 = scalar_lea.vmem %s2, %s346
      $region44: #{molconv2_forward.4} parent=35 // pred_fallthru
        _
    $region36: #{molconv2_forward.4} parent=5 // pred_fallthru
      _
  $region6: #{molconv2_forward.4} parent=0 // loop_footer
    %s13 = sadd.s32 1, %s9
  $region7: #{molconv2_forward.4} parent=0 // loop_footer_branch
    %8 = sbr.rel target = $region3
  $region8: #{molconv2_forward.4} parent=0 // loop_exit
    _

// kernel: molconv2_forward.5
$region0: #{molconv2_forward.5}
  #allocation0 [shape = 'u32[]', space=smem, size = 0x4, offset = 0x4, fixed_abs, tag = 'smem constant byte address 0x4 - core index']
  #allocation1 [shape = 'u32[144,128]{1,0:T(1,128)}', space=vmem, size = 0x12000, scoped, tag = 'internal scratch']
  %s0 = inlined_call_operand.vmem [shape: f32[2,4,16], index: 0, kind: input, shape index: {}]
  %s1 = inlined_call_operand.vmem [shape: f32[2,4,16], index: 1, kind: input, shape index: {}]
  %s2 = inlined_call_operand.vmem [shape: f32[2,4,11,16], index: 2, kind: input, shape index: {}]
  %s3 = inlined_call_operand.vmem [shape: f32[2,11,16], index: 3, kind: input, shape index: {}]
  %s4 = inlined_call_operand.vmem [shape: f32[2,4,4], index: 4, kind: input, shape index: {}]
  %s5 = inlined_call_operand.vmem [shape: f32[2], index: 5, kind: input, shape index: {}]
  %s6 = inlined_call_operand.vmem [shape: f32[11,11], index: 6, kind: input, shape index: {}]
  %s7 = inlined_call_operand.vmem [shape: f32[4,11], index: 7, kind: input, shape index: {}]
  %s8 = inlined_call_operand.vmem [shape: f32[11,1], index: 8, kind: input, shape index: {}]
  %s9 = inlined_call_operand.vmem [shape: f32[4,1], index: 9, kind: input, shape index: {}]
  %s10 = inlined_call_operand.vmem [shape: f32[16,11], index: 10, kind: input, shape index: {}]
  %s11 = inlined_call_operand.vmem [shape: f32[16,4], index: 11, kind: input, shape index: {}]
  %s12 = inlined_call_operand.vmem [shape: f32[16,1], index: 12, kind: input, shape index: {}]
  %s13 = inlined_call_operand.hbm [shape: f32[2,16,16], index: 13, kind: output, shape index: {}]
  %s14 = sld [smem:[#allocation0]]
  $region89: #{molconv2_forward.5} parent=0
    _
  %s16 = ssub.s32 1, %s14
  %s17 = scalar_select 0, %s16, %s14
  $region1: #{molconv2_forward.5} parent=0
    #allocation2 [shape = 'u8[512]{0}', space=smem, size = 0x200, scoped, tag = 'input window, operand 5, single buffered']
    #allocation3 [shape = 's32[2]{0}', space=sflag, size = 0x8, scoped, tag = 'scoped memory for molconv2_forward.5']
    #allocation4 [shape = 's32[2]{0}', space=sflag, size = 0x8, scoped, tag = 'scoped memory for molconv2_forward.5']
    #allocation5 [shape = 'u8[16384]{0}', space=vmem, size = 0x4000, scoped, tag = 'output window, operand 0']
    %18 = vsyncpa [#allocation4], 0
    %19 = vsyncpa [#allocation3], 0
    %s20 = scalar_lea.sflag [#allocation3], 1
    %21 = vsyncpa %s20, 0
    loop: start=0, step=1, limit=4
    $region2: #{molconv2_forward.5} parent=1 // loop_pre_header
      _
    $region3: #{molconv2_forward.5} parent=1 // loop_header
      %s23 = sphi 0, %s27
      %p24 = scmp.ge.s32.totalorder %s23, 4
      %s30 = sphi 0, %s42
      %s31 = sphi 0, %s38
      %s32 = sphi 0, %s30
      %s33 = sphi 0, %s31
      %s34 = sphi 0, %s32
      %s35 = sphi 0, %s33
      %s47 = sphi 0, %s49
      %s50 = sphi 0, %s47
      %s51 = sphi 0, %s50
      %s67 = sphi 0, %s51
      %s75 = sphi 0, %s77
      %s78 = sphi 0, %s75
      %s79 = sphi 0, %s78
      %s95 = sphi 0, %s79
      %s103 = sphi 0, %s105
      %s106 = sphi 0, %s103
      %s107 = sphi 0, %s106
      %s123 = sphi 0, %s107
      %s131 = sphi 0, %s133
      %s134 = sphi 0, %s131
      %s135 = sphi 0, %s134
      %s151 = sphi 0, %s135
      %s157 = sphi 0, %s159
      %s160 = sphi 0, %s157
      %s161 = sphi 0, %s160
      %s177 = sphi 0, %s161
      %s181 = sphi 0, %s181
      %s183 = sphi 0, %s181
      %s184 = sphi 0, %s183
      %s198 = sphi 0, %s184
      %s202 = sphi 0, %s202
      %s204 = sphi 0, %s202
      %s205 = sphi 0, %s204
      %s219 = sphi 0, %s205
      %s223 = sphi 0, %s223
      %s225 = sphi 0, %s223
      %s226 = sphi 0, %s225
      %s240 = sphi 0, %s226
      %s244 = sphi 0, %s244
      %s246 = sphi 0, %s244
      %s247 = sphi 0, %s246
      %s261 = sphi 0, %s247
      %s265 = sphi 0, %s265
      %s267 = sphi 0, %s265
      %s268 = sphi 0, %s267
      %s282 = sphi 0, %s268
      %s286 = sphi 0, %s286
      %s288 = sphi 0, %s286
      %s289 = sphi 0, %s288
      %s303 = sphi 0, %s289
      %s307 = sphi 0, %s307
      %s309 = sphi 0, %s307
      %s310 = sphi 0, %s309
      %s324 = sphi 0, %s310
      %s328 = sphi 0, %s328
      %s330 = sphi 0, %s328
      %s331 = sphi 0, %s330
      %s345 = sphi 0, %s331
      %s353 = sphi 0, %s355
      %s356 = sphi 0, %s353
      %s357 = sphi 0, %s356
      %s373 = sphi 0, %s357
    $region4: #{molconv2_forward.5} parent=1 // loop_header_branch
      %26 = sbr.rel (%p24) target = $region8
    $region5: #{molconv2_forward.5} parent=1 // loop_body
      %s28 = ssub.s32 %s23, 1
      %s29 = ssub.s32 %s23, 2
      %s36 = sadd.s32 1, %s31
      %p37 = scmp.ge.s32.totalorder %s36, 1
      %s38 = scalar_select %p37, 0, %s36
      %s39 = sadd.s32 1, %s30
      %s40 = scalar_select %p37, %s39, %s30
      %p41 = scmp.ge.s32.totalorder %s40, 2
      %s42 = scalar_select %p41, 0, %s40
      %s43 = ssub.s32 %s30, %s42
      %s44 = ssub.s32 %s31, %s38
      %s45 = sor.u32 %s43, %s44
      %p46 = scmp.eq.s32.totalorder %s45, 0
      %s48 = sadd.s32 %s47, 1
      %s49 = scalar_select %p46, %s47, %s48
      %p52 = pneg %p46
      %p53 = scmp.eq.s32.totalorder %s23, 1
      %p54 = por %p52, %p53
      %p55 = scmp.ne.s32.totalorder %s47, %s50
      %p56 = scmp.eq.s32.totalorder %s23, 0
      %p57 = por %p55, %p56
      %p58 = scmp.ne.s32.totalorder %s47, %s50
      %p59 = scmp.eq.s32.totalorder %s28, 1
      %p60 = por %p58, %p59
      %p61 = scmp.ne.s32.totalorder %s50, %s51
      %p62 = scmp.eq.s32.totalorder %s28, 0
      %p63 = por %p61, %p62
      %p64 = scmp.ne.s32.totalorder %s50, %s51
      %p65 = scmp.eq.s32.totalorder %s29, 1
      %p66 = por %p64, %p65
      %p68 = scmp.ne.s32.totalorder %s51, %s67
      %p69 = scmp.eq.s32.totalorder %s29, 0
      %p70 = por %p68, %p69
      %s71 = ssub.s32 %s30, %s42
      %s72 = ssub.s32 %s31, %s38
      %s73 = sor.u32 %s71, %s72
      %p74 = scmp.eq.s32.totalorder %s73, 0
      %s76 = sadd.s32 %s75, 1
      %s77 = scalar_select %p74, %s75, %s76
      %p80 = pneg %p74
      %p81 = scmp.eq.s32.totalorder %s23, 1
      %p82 = por %p80, %p81
      %p83 = scmp.ne.s32.totalorder %s75, %s78
      %p84 = scmp.eq.s32.totalorder %s23, 0
      %p85 = por %p83, %p84
      %p86 = scmp.ne.s32.totalorder %s75, %s78
      %p87 = scmp.eq.s32.totalorder %s28, 1
      %p88 = por %p86, %p87
      %p89 = scmp.ne.s32.totalorder %s78, %s79
      %p90 = scmp.eq.s32.totalorder %s28, 0
      %p91 = por %p89, %p90
      %p92 = scmp.ne.s32.totalorder %s78, %s79
      %p93 = scmp.eq.s32.totalorder %s29, 1
      %p94 = por %p92, %p93
      %p96 = scmp.ne.s32.totalorder %s79, %s95
      %p97 = scmp.eq.s32.totalorder %s29, 0
      %p98 = por %p96, %p97
      %s99 = ssub.s32 %s30, %s42
      %s100 = ssub.s32 %s31, %s38
      %s101 = sor.u32 %s99, %s100
      %p102 = scmp.eq.s32.totalorder %s101, 0
      %s104 = sadd.s32 %s103, 1
      %s105 = scalar_select %p102, %s103, %s104
      %p108 = pneg %p102
      %p109 = scmp.eq.s32.totalorder %s23, 1
      %p110 = por %p108, %p109
      %p111 = scmp.ne.s32.totalorder %s103, %s106
      %p112 = scmp.eq.s32.totalorder %s23, 0
      %p113 = por %p111, %p112
      %p114 = scmp.ne.s32.totalorder %s103, %s106
      %p115 = scmp.eq.s32.totalorder %s28, 1
      %p116 = por %p114, %p115
      %p117 = scmp.ne.s32.totalorder %s106, %s107
      %p118 = scmp.eq.s32.totalorder %s28, 0
      %p119 = por %p117, %p118
      %p120 = scmp.ne.s32.totalorder %s106, %s107
      %p121 = scmp.eq.s32.totalorder %s29, 1
      %p122 = por %p120, %p121
      %p124 = scmp.ne.s32.totalorder %s107, %s123
      %p125 = scmp.eq.s32.totalorder %s29, 0
      %p126 = por %p124, %p125
      %s127 = ssub.s32 %s30, %s42
      %s128 = ssub.s32 %s31, %s38
      %s129 = sor.u32 %s127, %s128
      %p130 = scmp.eq.s32.totalorder %s129, 0
      %s132 = sadd.s32 %s131, 1
      %s133 = scalar_select %p130, %s131, %s132
      %p136 = pneg %p130
      %p137 = scmp.eq.s32.totalorder %s23, 1
      %p138 = por %p136, %p137
      %p139 = scmp.ne.s32.totalorder %s131, %s134
      %p140 = scmp.eq.s32.totalorder %s23, 0
      %p141 = por %p139, %p140
      %p142 = scmp.ne.s32.totalorder %s131, %s134
      %p143 = scmp.eq.s32.totalorder %s28, 1
      %p144 = por %p142, %p143
      %p145 = scmp.ne.s32.totalorder %s134, %s135
      %p146 = scmp.eq.s32.totalorder %s28, 0
      %p147 = por %p145, %p146
      %p148 = scmp.ne.s32.totalorder %s134, %s135
      %p149 = scmp.eq.s32.totalorder %s29, 1
      %p150 = por %p148, %p149
      %p152 = scmp.ne.s32.totalorder %s135, %s151
      %p153 = scmp.eq.s32.totalorder %s29, 0
      %p154 = por %p152, %p153
      %s155 = ssub.s32 %s30, %s42
      %p156 = scmp.eq.s32.totalorder %s155, 0
      %s158 = sadd.s32 %s157, 1
      %s159 = scalar_select %p156, %s157, %s158
      %p162 = pneg %p156
      %p163 = scmp.eq.s32.totalorder %s23, 1
      %p164 = por %p162, %p163
      %p165 = scmp.ne.s32.totalorder %s157, %s160
      %p166 = scmp.eq.s32.totalorder %s23, 0
      %p167 = por %p165, %p166
      %p168 = scmp.ne.s32.totalorder %s157, %s160
      %p169 = scmp.eq.s32.totalorder %s28, 1
      %p170 = por %p168, %p169
      %p171 = scmp.ne.s32.totalorder %s160, %s161
      %p172 = scmp.eq.s32.totalorder %s28, 0
      %p173 = por %p171, %p172
      %p174 = scmp.ne.s32.totalorder %s160, %s161
      %p175 = scmp.eq.s32.totalorder %s29, 1
      %p176 = por %p174, %p175
      %p178 = scmp.ne.s32.totalorder %s161, %s177
      %p179 = scmp.eq.s32.totalorder %s29, 0
      %p180 = por %p178, %p179
      %s182 = sadd.s32 %s181, 1
      %p185 = scmp.eq.s32.totalorder %s23, 1
      %p186 = scmp.ne.s32.totalorder %s181, %s183
      %p187 = scmp.eq.s32.totalorder %s23, 0
      %p188 = por %p186, %p187
      %p189 = scmp.ne.s32.totalorder %s181, %s183
      %p190 = scmp.eq.s32.totalorder %s28, 1
      %p191 = por %p189, %p190
      %p192 = scmp.ne.s32.totalorder %s183, %s184
      %p193 = scmp.eq.s32.totalorder %s28, 0
      %p194 = por %p192, %p193
      %p195 = scmp.ne.s32.totalorder %s183, %s184
      %p196 = scmp.eq.s32.totalorder %s29, 1
      %p197 = por %p195, %p196
      %p199 = scmp.ne.s32.totalorder %s184, %s198
      %p200 = scmp.eq.s32.totalorder %s29, 0
      %p201 = por %p199, %p200
      %s203 = sadd.s32 %s202, 1
      %p206 = scmp.eq.s32.totalorder %s23, 1
      %p207 = scmp.ne.s32.totalorder %s202, %s204
      %p208 = scmp.eq.s32.totalorder %s23, 0
      %p209 = por %p207, %p208
      %p210 = scmp.ne.s32.totalorder %s202, %s204
      %p211 = scmp.eq.s32.totalorder %s28, 1
      %p212 = por %p210, %p211
      %p213 = scmp.ne.s32.totalorder %s204, %s205
      %p214 = scmp.eq.s32.totalorder %s28, 0
      %p215 = por %p213, %p214
      %p216 = scmp.ne.s32.totalorder %s204, %s205
      %p217 = scmp.eq.s32.totalorder %s29, 1
      %p218 = por %p216, %p217
      %p220 = scmp.ne.s32.totalorder %s205, %s219
      %p221 = scmp.eq.s32.totalorder %s29, 0
      %p222 = por %p220, %p221
      %s224 = sadd.s32 %s223, 1
      %p227 = scmp.eq.s32.totalorder %s23, 1
      %p228 = scmp.ne.s32.totalorder %s223, %s225
      %p229 = scmp.eq.s32.totalorder %s23, 0
      %p230 = por %p228, %p229
      %p231 = scmp.ne.s32.totalorder %s223, %s225
      %p232 = scmp.eq.s32.totalorder %s28, 1
      %p233 = por %p231, %p232
      %p234 = scmp.ne.s32.totalorder %s225, %s226
      %p235 = scmp.eq.s32.totalorder %s28, 0
      %p236 = por %p234, %p235
      %p237 = scmp.ne.s32.totalorder %s225, %s226
      %p238 = scmp.eq.s32.totalorder %s29, 1
      %p239 = por %p237, %p238
      %p241 = scmp.ne.s32.totalorder %s226, %s240
      %p242 = scmp.eq.s32.totalorder %s29, 0
      %p243 = por %p241, %p242
      %s245 = sadd.s32 %s244, 1
      %p248 = scmp.eq.s32.totalorder %s23, 1
      %p249 = scmp.ne.s32.totalorder %s244, %s246
      %p250 = scmp.eq.s32.totalorder %s23, 0
      %p251 = por %p249, %p250
      %p252 = scmp.ne.s32.totalorder %s244, %s246
      %p253 = scmp.eq.s32.totalorder %s28, 1
      %p254 = por %p252, %p253
      %p255 = scmp.ne.s32.totalorder %s246, %s247
      %p256 = scmp.eq.s32.totalorder %s28, 0
      %p257 = por %p255, %p256
      %p258 = scmp.ne.s32.totalorder %s246, %s247
      %p259 = scmp.eq.s32.totalorder %s29, 1
      %p260 = por %p258, %p259
      %p262 = scmp.ne.s32.totalorder %s247, %s261
      %p263 = scmp.eq.s32.totalorder %s29, 0
      %p264 = por %p262, %p263
      %s266 = sadd.s32 %s265, 1
      %p269 = scmp.eq.s32.totalorder %s23, 1
      %p270 = scmp.ne.s32.totalorder %s265, %s267
      %p271 = scmp.eq.s32.totalorder %s23, 0
      %p272 = por %p270, %p271
      %p273 = scmp.ne.s32.totalorder %s265, %s267
      %p274 = scmp.eq.s32.totalorder %s28, 1
      %p275 = por %p273, %p274
      %p276 = scmp.ne.s32.totalorder %s267, %s268
      %p277 = scmp.eq.s32.totalorder %s28, 0
      %p278 = por %p276, %p277
      %p279 = scmp.ne.s32.totalorder %s267, %s268
      %p280 = scmp.eq.s32.totalorder %s29, 1
      %p281 = por %p279, %p280
      %p283 = scmp.ne.s32.totalorder %s268, %s282
      %p284 = scmp.eq.s32.totalorder %s29, 0
      %p285 = por %p283, %p284
      %s287 = sadd.s32 %s286, 1
      %p290 = scmp.eq.s32.totalorder %s23, 1
      %p291 = scmp.ne.s32.totalorder %s286, %s288
      %p292 = scmp.eq.s32.totalorder %s23, 0
      %p293 = por %p291, %p292
      %p294 = scmp.ne.s32.totalorder %s286, %s288
      %p295 = scmp.eq.s32.totalorder %s28, 1
      %p296 = por %p294, %p295
      %p297 = scmp.ne.s32.totalorder %s288, %s289
      %p298 = scmp.eq.s32.totalorder %s28, 0
      %p299 = por %p297, %p298
      %p300 = scmp.ne.s32.totalorder %s288, %s289
      %p301 = scmp.eq.s32.totalorder %s29, 1
      %p302 = por %p300, %p301
      %p304 = scmp.ne.s32.totalorder %s289, %s303
      %p305 = scmp.eq.s32.totalorder %s29, 0
      %p306 = por %p304, %p305
      %s308 = sadd.s32 %s307, 1
      %p311 = scmp.eq.s32.totalorder %s23, 1
      %p312 = scmp.ne.s32.totalorder %s307, %s309
      %p313 = scmp.eq.s32.totalorder %s23, 0
      %p314 = por %p312, %p313
      %p315 = scmp.ne.s32.totalorder %s307, %s309
      %p316 = scmp.eq.s32.totalorder %s28, 1
      %p317 = por %p315, %p316
      %p318 = scmp.ne.s32.totalorder %s309, %s310
      %p319 = scmp.eq.s32.totalorder %s28, 0
      %p320 = por %p318, %p319
      %p321 = scmp.ne.s32.totalorder %s309, %s310
      %p322 = scmp.eq.s32.totalorder %s29, 1
      %p323 = por %p321, %p322
      %p325 = scmp.ne.s32.totalorder %s310, %s324
      %p326 = scmp.eq.s32.totalorder %s29, 0
      %p327 = por %p325, %p326
      %s329 = sadd.s32 %s328, 1
      %p332 = scmp.eq.s32.totalorder %s23, 1
      %p333 = scmp.ne.s32.totalorder %s328, %s330
      %p334 = scmp.eq.s32.totalorder %s23, 0
      %p335 = por %p333, %p334
      %p336 = scmp.ne.s32.totalorder %s328, %s330
      %p337 = scmp.eq.s32.totalorder %s28, 1
      %p338 = por %p336, %p337
      %p339 = scmp.ne.s32.totalorder %s330, %s331
      %p340 = scmp.eq.s32.totalorder %s28, 0
      %p341 = por %p339, %p340
      %p342 = scmp.ne.s32.totalorder %s330, %s331
      %p343 = scmp.eq.s32.totalorder %s29, 1
      %p344 = por %p342, %p343
      %p346 = scmp.ne.s32.totalorder %s331, %s345
      %p347 = scmp.eq.s32.totalorder %s29, 0
      %p348 = por %p346, %p347
      %s349 = ssub.s32 %s30, %s42
      %s350 = ssub.s32 %s31, %s38
      %s351 = sor.u32 %s349, %s350
      %p352 = scmp.eq.s32.totalorder %s351, 0
      %s354 = sadd.s32 %s353, 1
      %s355 = scalar_select %p352, %s353, %s354
      %p358 = pneg %p352
      %p359 = scmp.eq.s32.totalorder %s23, 1
      %p360 = por %p358, %p359
      %p361 = scmp.ne.s32.totalorder %s353, %s356
      %p362 = scmp.eq.s32.totalorder %s23, 0
      %p363 = por %p361, %p362
      %p364 = scmp.ne.s32.totalorder %s353, %s356
      %p365 = scmp.eq.s32.totalorder %s28, 1
      %p366 = por %p364, %p365
      %p367 = scmp.ne.s32.totalorder %s356, %s357
      %p368 = scmp.eq.s32.totalorder %s28, 0
      %p369 = por %p367, %p368
      %p370 = scmp.ne.s32.totalorder %s356, %s357
      %p371 = scmp.eq.s32.totalorder %s29, 1
      %p372 = por %p370, %p371
      %p374 = scmp.ne.s32.totalorder %s357, %s373
      %p375 = scmp.eq.s32.totalorder %s29, 0
      %p376 = por %p374, %p375
      %p377 = scmp.le.s32.totalorder 1, %s23
      %p378 = scmp.lt.s32.totalorder %s23, 3
      %p379 = pnand %p377, %p378
      %p380 = pneg %p379
      // Predicated region
      $region9: #{molconv2_forward.5} parent=5 // pred_check
        _
      $region10: #{molconv2_forward.5} parent=5 // pred_check_branch
        %382 = sbr.rel (%p379) target = $region12
      $region11: #{molconv2_forward.5} parent=5 // pred_region
        %s383 = ssub.s32 %s23, 1
        // Predicated region
        $region13: #{molconv2_forward.5} parent=11 // pred_check
          %p384 = pneg %p194
        $region14: #{molconv2_forward.5} parent=11 // pred_check_branch
          %386 = sbr.rel (%p384) target = $region16
        $region15: #{molconv2_forward.5} parent=11 // pred_region
          %s388 = ssub.s32 16, 16
          %389 = vsyncadd [#allocation4], %s388
          %s391 = sshll.u32 %s5, 4
          %s392 = int_to_ptr.vmem [resolvable:$true] %s391
          %394 = dma.vmem_to_smem %s392, 16, [#allocation2], [#allocation4]
        $region16: #{molconv2_forward.5} parent=11 // pred_fallthru
          _
        // Predicated region
        $region17: #{molconv2_forward.5} parent=11 // pred_check
          %p395 = pneg %p215
        $region18: #{molconv2_forward.5} parent=11 // pred_check_branch
          %397 = sbr.rel (%p395) target = $region20
        $region19: #{molconv2_forward.5} parent=11 // pred_region
          _
        $region20: #{molconv2_forward.5} parent=11 // pred_fallthru
          _
        // Predicated region
        $region21: #{molconv2_forward.5} parent=11 // pred_check
          %p398 = pneg %p236
        $region22: #{molconv2_forward.5} parent=11 // pred_check_branch
          %400 = sbr.rel (%p398) target = $region24
        $region23: #{molconv2_forward.5} parent=11 // pred_region
          _
        $region24: #{molconv2_forward.5} parent=11 // pred_fallthru
          _
        // Predicated region
        $region25: #{molconv2_forward.5} parent=11 // pred_check
          %p401 = pneg %p257
        $region26: #{molconv2_forward.5} parent=11 // pred_check_branch
          %403 = sbr.rel (%p401) target = $region28
        $region27: #{molconv2_forward.5} parent=11 // pred_region
          _
        $region28: #{molconv2_forward.5} parent=11 // pred_fallthru
          _
        // Predicated region
        $region29: #{molconv2_forward.5} parent=11 // pred_check
          %p404 = pneg %p278
        $region30: #{molconv2_forward.5} parent=11 // pred_check_branch
          %406 = sbr.rel (%p404) target = $region32
        $region31: #{molconv2_forward.5} parent=11 // pred_region
          _
        $region32: #{molconv2_forward.5} parent=11 // pred_fallthru
          _
        // Predicated region
        $region33: #{molconv2_forward.5} parent=11 // pred_check
          %p407 = pneg %p299
        $region34: #{molconv2_forward.5} parent=11 // pred_check_branch
          %409 = sbr.rel (%p407) target = $region36
        $region35: #{molconv2_forward.5} parent=11 // pred_region
          _
        $region36: #{molconv2_forward.5} parent=11 // pred_fallthru
          _
        // Predicated region
        $region37: #{molconv2_forward.5} parent=11 // pred_check
          %p410 = pneg %p320
        $region38: #{molconv2_forward.5} parent=11 // pred_check_branch
          %412 = sbr.rel (%p410) target = $region40
        $region39: #{molconv2_forward.5} parent=11 // pred_region
          _
        $region40: #{molconv2_forward.5} parent=11 // pred_fallthru
          _
        // Predicated region
        $region41: #{molconv2_forward.5} parent=11 // pred_check
          %p413 = pneg %p341
        $region42: #{molconv2_forward.5} parent=11 // pred_check_branch
          %415 = sbr.rel (%p413) target = $region44
        $region43: #{molconv2_forward.5} parent=11 // pred_region
          _
        $region44: #{molconv2_forward.5} parent=11 // pred_fallthru
          _
      $region12: #{molconv2_forward.5} parent=5 // pred_fallthru
        _
      %p416 = scmp.lt.s32.totalorder %s23, 2
      // Predicated region
      $region45: #{molconv2_forward.5} parent=5 // pred_check
        %p417 = pneg %p416
      $region46: #{molconv2_forward.5} parent=5 // pred_check_branch
        %419 = sbr.rel (%p417) target = $region48
      $region47: #{molconv2_forward.5} parent=5 // pred_region
        // Predicated region
        $region49: #{molconv2_forward.5} parent=47 // pred_check
          %p420 = pneg %p57
        $region50: #{molconv2_forward.5} parent=47 // pred_check_branch
          %422 = sbr.rel (%p420) target = $region52
        $region51: #{molconv2_forward.5} parent=47 // pred_region
          %p423 = scmp.lt.s32.totalorder %s30, 1
          %s424 = scalar_select %p423, %s30, 1
          %p425 = scmp.lt.s32.totalorder %s31, 0
          %s426 = scalar_select %p425, %s31, 0
          %s427 = sadd.s32 %s426, %s424
          %s428 = smul.addr %s427, 4
          %s429 = scalar_lea.vmem %s0, %s428
        $region52: #{molconv2_forward.5} parent=47 // pred_fallthru
          _
        // Predicated region
        $region53: #{molconv2_forward.5} parent=47 // pred_check
          %p430 = pneg %p85
        $region54: #{molconv2_forward.5} parent=47 // pred_check_branch
          %432 = sbr.rel (%p430) target = $region56
        $region55: #{molconv2_forward.5} parent=47 // pred_region
          %p433 = scmp.lt.s32.totalorder %s30, 1
          %s434 = scalar_select %p433, %s30, 1
          %p435 = scmp.lt.s32.totalorder %s31, 0
          %s436 = scalar_select %p435, %s31, 0
          %s437 = sadd.s32 %s436, %s434
          %s438 = smul.addr %s437, 4
          %s439 = scalar_lea.vmem %s1, %s438
        $region56: #{molconv2_forward.5} parent=47 // pred_fallthru
          _
        // Predicated region
        $region57: #{molconv2_forward.5} parent=47 // pred_check
          %p440 = pneg %p113
        $region58: #{molconv2_forward.5} parent=47 // pred_check_branch
          %442 = sbr.rel (%p440) target = $region60
        $region59: #{molconv2_forward.5} parent=47 // pred_region
          %p443 = scmp.lt.s32.totalorder %s30, 1
          %s444 = scalar_select %p443, %s30, 1
          %p445 = scmp.lt.s32.totalorder %s31, 0
          %s446 = scalar_select %p445, %s31, 0
          %s447 = smul.addr %s444, 8
          %s448 = sadd.s32 %s446, %s447
          %s449 = smul.addr %s448, 8
          %s450 = scalar_lea.vmem %s2, %s449
        $region60: #{molconv2_forward.5} parent=47 // pred_fallthru
          _
        // Predicated region
        $region61: #{molconv2_forward.5} parent=47 // pred_check
          %p451 = pneg %p141
        $region62: #{molconv2_forward.5} parent=47 // pred_check_branch
          %453 = sbr.rel (%p451) target = $region64
        $region63: #{molconv2_forward.5} parent=47 // pred_region
          %p454 = scmp.lt.s32.totalorder %s30, 1
          %s455 = scalar_select %p454, %s30, 1
          %p456 = scmp.lt.s32.totalorder %s31, 0
          %s457 = scalar_select %p456, %s31, 0
          %s458 = smul.addr %s455, 2
          %s459 = sadd.s32 %s457, %s458
          %s460 = smul.addr %s459, 8
          %s461 = scalar_lea.vmem %s3, %s460
        $region64: #{molconv2_forward.5} parent=47 // pred_fallthru
          _
        // Predicated region
        $region65: #{molconv2_forward.5} parent=47 // pred_check
          %p462 = pneg %p167
        $region66: #{molconv2_forward.5} parent=47 // pred_check_branch
          %464 = sbr.rel (%p462) target = $region68
        $region67: #{molconv2_forward.5} parent=47 // pred_region
          %p465 = scmp.lt.s32.totalorder %s30, 1
          %s466 = scalar_select %p465, %s30, 1
          %s467 = smul.addr %s466, 4
          %s468 = scalar_lea.vmem %s4, %s467
        $region68: #{molconv2_forward.5} parent=47 // pred_fallthru
          _
      $region48: #{molconv2_forward.5} parent=5 // pred_fallthru
        _
      %p469 = scmp.le.s32.totalorder 1, %s23
      %p470 = scmp.lt.s32.totalorder %s23, 3
      %p471 = pnand %p469, %p470
      %p472 = pneg %p471
      // Predicated region
      $region69: #{molconv2_forward.5} parent=5 // pred_check
        _
      $region70: #{molconv2_forward.5} parent=5 // pred_check_branch
        %474 = sbr.rel (%p471) target = $region72
      $region71: #{molconv2_forward.5} parent=5 // pred_region
        %s475 = ssub.s32 %s23, 1
        // Predicated region
        $region73: #{molconv2_forward.5} parent=71 // pred_check
          %p476 = pneg %p194
        $region74: #{molconv2_forward.5} parent=71 // pred_check_branch
          %478 = sbr.rel (%p476) target = $region76
        $region75: #{molconv2_forward.5} parent=71 // pred_region
          %479 = dma.done [#allocation4], 16
        $region76: #{molconv2_forward.5} parent=71 // pred_fallthru
          _
        %480 = sfence
        %p481 = scmp.lt.s32.totalorder %s32, 1
        %s482 = scalar_select %p481, %s32, 1
        %p483 = scmp.lt.s32.totalorder %s33, 0
        %s484 = scalar_select %p483, %s33, 0
        %s485 = sadd.s32 %s484, %s482
        %s486 = smul.addr %s485, 4
        %s487 = scalar_lea.vmem %s0, %s486
        %p488 = pneg %p63
        %p489 = pneg %p60
        %p490 = scmp.lt.s32.totalorder %s32, 1
        %s491 = scalar_select %p490, %s32, 1
        %p492 = scmp.lt.s32.totalorder %s33, 0
        %s493 = scalar_select %p492, %s33, 0
        %s494 = sadd.s32 %s493, %s491
        %s495 = smul.addr %s494, 4
        %s496 = scalar_lea.vmem %s1, %s495
        %p497 = pneg %p91
        %p498 = pneg %p88
        %p499 = scmp.lt.s32.totalorder %s32, 1
        %s500 = scalar_select %p499, %s32, 1
        %p501 = scmp.lt.s32.totalorder %s33, 0
        %s502 = scalar_select %p501, %s33, 0
        %s503 = smul.addr %s500, 8
        %s504 = sadd.s32 %s502, %s503
        %s505 = smul.addr %s504, 8
        %s506 = scalar_lea.vmem %s2, %s505
        %p507 = pneg %p119
        %p508 = pneg %p116
        %p509 = scmp.lt.s32.totalorder %s32, 1
        %s510 = scalar_select %p509, %s32, 1
        %p511 = scmp.lt.s32.totalorder %s33, 0
        %s512 = scalar_select %p511, %s33, 0
        %s513 = smul.addr %s510, 2
        %s514 = sadd.s32 %s512, %s513
        %s515 = smul.addr %s514, 8
        %s516 = scalar_lea.vmem %s3, %s515
        %p517 = pneg %p147
        %p518 = pneg %p144
        %p519 = scmp.lt.s32.totalorder %s32, 1
        %s520 = scalar_select %p519, %s32, 1
        %s521 = smul.addr %s520, 4
        %s522 = scalar_lea.vmem %s4, %s521
        %p523 = pneg %p173
        %p524 = pneg %p170
        %p525 = pneg %p194
        %p526 = pneg %p191
        %p527 = pneg %p215
        %p528 = pneg %p212
        %p529 = pneg %p236
        %p530 = pneg %p233
        %p531 = pneg %p257
        %p532 = pneg %p254
        %p533 = pneg %p278
        %p534 = pneg %p275
        %p535 = pneg %p299
        %p536 = pneg %p296
        %p537 = pneg %p320
        %p538 = pneg %p317
        %p539 = pneg %p341
        %p540 = pneg %p338
        %p541 = pneg %p369
        %p542 = pneg %p366
        %s543 = sand.u32 %s356, 1
        %s544 = scalar_lea.sflag [#allocation3], %s543
        %s545 = sand.u32 %s356, 1
        %s546 = smul.addr %s545, 16
        %s547 = scalar_lea.vmem [#allocation5], %s546
        %p548 = scmp.lt.s32.totalorder %s32, 1
        %s549 = scalar_select %p548, %s32, 1
        %p550 = scmp.lt.s32.totalorder %s33, 0
        %s551 = scalar_select %p550, %s33, 0
        %s552 = sadd.s32 %s551, %s549
        %s553 = smul.addr %s552, 4
        %s554 = scalar_lea.vmem %s0, %s553
        %p555 = scmp.lt.s32.totalorder %s32, 1
        %s556 = scalar_select %p555, %s32, 1
        %p557 = scmp.lt.s32.totalorder %s33, 0
        %s558 = scalar_select %p557, %s33, 0
        %s559 = sadd.s32 %s558, %s556
        %s560 = smul.addr %s559, 4
        %s561 = scalar_lea.vmem %s1, %s560
        %p562 = scmp.lt.s32.totalorder %s32, 1
        %s563 = scalar_select %p562, %s32, 1
        %p564 = scmp.lt.s32.totalorder %s33, 0
        %s565 = scalar_select %p564, %s33, 0
        %s566 = smul.addr %s563, 8
        %s567 = sadd.s32 %s565, %s566
        %s568 = smul.addr %s567, 8
        %s569 = scalar_lea.vmem %s2, %s568
        %p570 = scmp.lt.s32.totalorder %s32, 1
        %s571 = scalar_select %p570, %s32, 1
        %p572 = scmp.lt.s32.totalorder %s33, 0
        %s573 = scalar_select %p572, %s33, 0
        %s574 = smul.addr %s571, 2
        %s575 = sadd.s32 %s573, %s574
        %s576 = smul.addr %s575, 8
        %s577 = scalar_lea.vmem %s3, %s576
        %p578 = scmp.lt.s32.totalorder %s32, 1
        %s579 = scalar_select %p578, %s32, 1
        %s580 = smul.addr %s579, 4
        %s581 = scalar_lea.vmem %s4, %s580
        %v582 = vld [vmem:[%s554] sm:$0xf]
        %v583 = vld [vmem:[%s561] sm:$0xf]
        %v584 = vld [vmem:[%s569] sm:$0xff]
        %v585 = vld [vmem:[%s569 + $0x8] sm:$0x7]
        %v586 = vld [vmem:[%s569 + $0x10] sm:$0xff]
        %v587 = vld [vmem:[%s569 + $0x18] sm:$0x7]
        %v588 = vld [vmem:[%s569 + $0x20] sm:$0xff]
        %v589 = vld [vmem:[%s569 + $0x28] sm:$0x7]
        %v590 = vld [vmem:[%s569 + $0x30] sm:$0xff]
        %v591 = vld [vmem:[%s569 + $0x38] sm:$0x7]
        %v592 = vld [vmem:[%s577] sm:$0xff]
        %v593 = vld [vmem:[%s577 + $0x8] sm:$0x7]
        %v594 = vld [vmem:[%s581] sm:$0xf]
        %s595 = sld [smem:[#allocation2]]
        %v596 = vstv %s595
        %v597 = vmul.f32 %v582, %v596
        %s598 = sld [smem:[#allocation2 + $0x1]]
        %v599 = vstv %s598
        %v600 = vadd.f32 %v597, %v599
        %v601 = vxor.u32 %v600, 2147483648
        %v602 = vmul.f32 %v601, 1.442695
        %v603 = vpow.pop %v602
        %v604 = vadd.f32 %v603, 1.0
        %v605 = vrcp.pop %v604
        %v606 = vmul.f32 1.0, %v605
        %v607 = vld [vmem:[%s6] sm:$0xff]
        %v608 = vld [vmem:[%s6 + $0x8] sm:$0x7]
        %v609 = vld [vmem:[%s8] sm:$0xff]
        %v610 = vld [vmem:[%s8 + $0x8] sm:$0x7]
        %612 = vset.pattern.permute.xlu0 0
        %613 = vperm.xlu0 %612, %v609
        %v614 = vpop.permute.xlu0 %613
        %617 = vset.pattern.permute.xlu0 0
        %618 = vperm.xlu0 %617, %v610
        %v619 = vpop.permute.xlu0 %618
        %vm621 = vcmask 89088
        %v623 = vsel %vm621, %v607, 0
        %v626 = vsel %vm621, %v608, 0
        %vm628 = vcmask 1042432
        %v630 = vsel %vm628, %v593, 0
        %632 = vmatprep.subr.mxu0 0.0
        %633 = vmatpush1.msra.mxu0 %v592
        %634 = vmatprep.subr.mxu0 0.0
        %635 = vmatpush1.msra.mxu0 %v630
        %636 = vmatprep.subr.mxu0 0.0
        %637 = vmatpush1.msra.mxu0 0.0
        %638 = vmatprep.subr.mxu0 0.0
        %639 = vmatpush1.msra.mxu0 0.0
        %640 = vmatprep.subr.mxu0 0.0
        %641 = vmatpush1.msra.mxu0 0.0
        %642 = vmatprep.subr.mxu0 0.0
        %643 = vmatpush1.msra.mxu0 0.0
        %644 = vmatprep.subr.mxu0 0.0
        %645 = vmatpush1.msra.mxu0 0.0
        %646 = vmatprep.subr.mxu0 0.0
        %647 = vmatpush1.msra.mxu0 0.0
        %648 = vmatprep.subr.mxu0 0.0
        %649 = vmatpush1.msra.mxu0 0.0
        %650 = vmatprep.subr.mxu0 0.0
        %651 = vmatpush1.msra.mxu0 0.0
        %652 = vmatprep.subr.mxu0 0.0
        %653 = vmatpush1.msra.mxu0 0.0
        %654 = vmatprep.subr.mxu0 0.0
        %655 = vmatpush1.msra.mxu0 0.0
        %656 = vmatprep.subr.mxu0 0.0
        %657 = vmatpush1.msra.mxu0 0.0
        %658 = vmatprep.subr.mxu0 0.0
        %659 = vmatpush1.msra.mxu0 0.0
        %660 = vmatprep.subr.mxu0 0.0
        %661 = vmatpush1.msra.mxu0 0.0
        %662 = vmatprep.subr.mxu0 0.0
        %663 = vmatpush1.msra.mxu0 0.0
        %664 = vmatprep.subr.mxu0 0.0
        %665 = vmatpush1.msra.mxu0 0.0
        %666 = vmatprep.subr.mxu0 0.0
        %667 = vmatpush1.msra.mxu0 0.0
        %668 = vmatprep.subr.mxu0 0.0
        %669 = vmatpush1.msra.mxu0 0.0
        %670 = vmatprep.subr.mxu0 0.0
        %671 = vmatpush1.msra.mxu0 0.0
        %672 = vmatprep.subr.mxu0 0.0
        %673 = vmatpush1.msra.mxu0 0.0
        %674 = vmatprep.subr.mxu0 0.0
        %675 = vmatpush1.msra.mxu0 0.0
        %676 = vmatprep.subr.mxu0 0.0
        %677 = vmatpush1.msra.mxu0 0.0
        %678 = vmatprep.subr.mxu0 0.0
        %679 = vmatpush1.msra.mxu0 0.0
        %680 = vmatprep.subr.mxu0 0.0
        %681 = vmatpush1.msra.mxu0 0.0
        %682 = vmatprep.subr.mxu0 0.0
        %683 = vmatpush1.msra.mxu0 0.0
        %684 = vmatprep.subr.mxu0 0.0
        %685 = vmatpush1.msra.mxu0 0.0
        %686 = vmatprep.subr.mxu0 0.0
        %687 = vmatpush1.msra.mxu0 0.0
        %688 = vmatprep.subr.mxu0 0.0
        %689 = vmatpush1.msra.mxu0 0.0
        %690 = vmatprep.subr.mxu0 0.0
        %691 = vmatpush1.msra.mxu0 0.0
        %692 = vmatprep.subr.mxu0 0.0
        %693 = vmatpush1.msra.mxu0 0.0
        %694 = vmatprep.subr.mxu0 0.0
        %695 = vmatpush1.msra.mxu0 0.0
        %696 = vmatprep.mubr.f32.mxu0 0.0
        %697 = vmatmul.mubr.f32.gmra.mrb[0].mxu0 %v623
        %v698 = vpop.f32.mrb[0].mxu0
        %v699 = vadd.f32 %v614, %v698
        %v700 = vpop.f32.mrb[0].mxu0
        %701 = vmatprep.mubr.f32.mxu0 0.0
        %702 = vmatmul.mubr.f32.gmra.mrb[0].mxu0 %v626
        %v703 = vpop.f32.mrb[0].mxu0
        %v704 = vadd.f32 %v619, %v703
        %v705 = vpop.f32.mrb[0].mxu0
        %706 = vdwg.mxu0
        %v707 = vxor.u32 %v699, 2147483648
        %v708 = vxor.u32 %v704, 2147483648
        %v709 = vmul.f32 %v707, 1.442695
        %v710 = vpow.pop %v709
        %v711 = vmul.f32 %v708, 1.442695
        %v712 = vpow.pop %v711
        %v713 = vadd.f32 %v710, 1.0
        %v714 = vadd.f32 %v712, 1.0
        %v715 = vrcp.pop %v713
        %v716 = vmul.f32 1.0, %v715
        %v717 = vrcp.pop %v714
        %v718 = vmul.f32 1.0, %v717
        %v719 = vld [vmem:[%s7] sm:$0xf]
        %v720 = vld [vmem:[%s9] sm:$0xf]
        %722 = vset.pattern.permute.xlu0 0
        %723 = vperm.xlu0 %722, %v720
        %v724 = vpop.permute.xlu0 %723
        %v727 = vsel %vm621, %v719, 0
        %729 = vmatprep.subr.mxu0 0.0
        %730 = vmatpush1.msra.mxu0 %v592
        %731 = vmatprep.subr.mxu0 0.0
        %732 = vmatpush1.msra.mxu0 %v630
        %733 = vmatprep.subr.mxu0 0.0
        %734 = vmatpush1.msra.mxu0 0.0
        %735 = vmatprep.subr.mxu0 0.0
        %736 = vmatpush1.msra.mxu0 0.0
        %737 = vmatprep.subr.mxu0 0.0
        %738 = vmatpush1.msra.mxu0 0.0
        %739 = vmatprep.subr.mxu0 0.0
        %740 = vmatpush1.msra.mxu0 0.0
        %741 = vmatprep.subr.mxu0 0.0
        %742 = vmatpush1.msra.mxu0 0.0
        %743 = vmatprep.subr.mxu0 0.0
        %744 = vmatpush1.msra.mxu0 0.0
        %745 = vmatprep.subr.mxu0 0.0
        %746 = vmatpush1.msra.mxu0 0.0
        %747 = vmatprep.subr.mxu0 0.0
        %748 = vmatpush1.msra.mxu0 0.0
        %749 = vmatprep.subr.mxu0 0.0
        %750 = vmatpush1.msra.mxu0 0.0
        %751 = vmatprep.subr.mxu0 0.0
        %752 = vmatpush1.msra.mxu0 0.0
        %753 = vmatprep.subr.mxu0 0.0
        %754 = vmatpush1.msra.mxu0 0.0
        %755 = vmatprep.subr.mxu0 0.0
        %756 = vmatpush1.msra.mxu0 0.0
        %757 = vmatprep.subr.mxu0 0.0
        %758 = vmatpush1.msra.mxu0 0.0
        %759 = vmatprep.subr.mxu0 0.0
        %760 = vmatpush1.msra.mxu0 0.0
        %761 = vmatprep.subr.mxu0 0.0
        %762 = vmatpush1.msra.mxu0 0.0
        %763 = vmatprep.subr.mxu0 0.0
        %764 = vmatpush1.msra.mxu0 0.0
        %765 = vmatprep.subr.mxu0 0.0
        %766 = vmatpush1.msra.mxu0 0.0
        %767 = vmatprep.subr.mxu0 0.0
        %768 = vmatpush1.msra.mxu0 0.0
        %769 = vmatprep.subr.mxu0 0.0
        %770 = vmatpush1.msra.mxu0 0.0
        %771 = vmatprep.subr.mxu0 0.0
        %772 = vmatpush1.msra.mxu0 0.0
        %773 = vmatprep.subr.mxu0 0.0
        %774 = vmatpush1.msra.mxu0 0.0
        %775 = vmatprep.subr.mxu0 0.0
        %776 = vmatpush1.msra.mxu0 0.0
        %777 = vmatprep.subr.mxu0 0.0
        %778 = vmatpush1.msra.mxu0 0.0
        %779 = vmatprep.subr.mxu0 0.0
        %780 = vmatpush1.msra.mxu0 0.0
        %781 = vmatprep.subr.mxu0 0.0
        %782 = vmatpush1.msra.mxu0 0.0
        %783 = vmatprep.subr.mxu0 0.0
        %784 = vmatpush1.msra.mxu0 0.0
        %785 = vmatprep.subr.mxu0 0.0
        %786 = vmatpush1.msra.mxu0 0.0
        %787 = vmatprep.subr.mxu0 0.0
        %788 = vmatpush1.msra.mxu0 0.0
        %789 = vmatprep.subr.mxu0 0.0
        %790 = vmatpush1.msra.mxu0 0.0
        %791 = vmatprep.subr.mxu0 0.0
        %792 = vmatpush1.msra.mxu0 0.0
        %793 = vmatprep.mubr.f32.mxu0 0.0
        %794 = vmatmul.mubr.f32.gmra.mrb[0].mxu0 %v727
        %v795 = vpop.f32.mrb[0].mxu0
        %v796 = vadd.f32 %v724, %v795
        %v797 = vpop.f32.mrb[0].mxu0
        %798 = vdwg.mxu0
        %v799 = vxor.u32 %v796, 2147483648
        %v800 = vmul.f32 %v799, 1.442695
        %v801 = vpow.pop %v800
        %v802 = vadd.f32 %v801, 1.0
        %v803 = vrcp.pop %v802
        %v804 = vmul.f32 1.0, %v803
        %v805 = vld [vmem:[%s10] sm:$0xff]
        %v806 = vld [vmem:[%s10 + $0x8] sm:$0xff]
        %v807 = vld [vmem:[%s11] sm:$0xff]
        %v808 = vld [vmem:[%s11 + $0x8] sm:$0xff]
        %v809 = vld [vmem:[%s12] sm:$0xff]
        %v810 = vld [vmem:[%s12 + $0x8] sm:$0xff]
        %v811 = vlaneseq
        %v812 = vshrl.u32 %v811, 7
        %v813 = vsub.s32 0, %v812
        %v814 = vrot.slane %v583, %v813
        %v815 = vmul.f32 %v814, %v583
        %v816 = vlaneseq
        %v817 = vshrl.u32 %v816, 7
        %v818 = vsub.s32 0, %v817
        %v819 = vrot.slane %v594, %v818
        %821 = vbcast.lane.b32.xlu0 %v819, 256
        %v822 = vpop.permute.xlu0 %821
        %v823 = vmul.f32 %v815, %v822
        %v824 = vlaneseq
        %v825 = vshrl.u32 %v824, 7
        %v826 = vsub.s32 0, %v825
        %v827 = vrot.slane %v606, %v826
        %v828 = vmul.f32 %v827, %v584
        %v829 = vmul.f32 %v827, %v585
        %v830 = vadd.f32 %v828, %v716
        %v831 = vadd.f32 %v829, %v718
        %v832 = vmul.f32 %v827, %v823
        %v833 = vadd.f32 %v832, %v804
        %vm834 = vcmask 31744
        %v836 = vsel %vm834, %v807, 0
        %v839 = vsel %vm834, %v808, 0
        %vm841 = vcmask 1043456
        %v843 = vsel %vm841, %v833, 0
        %845 = vmatprep.subr.mxu0 0.0
        %846 = vmatpush1.msra.mxu0 %v843
        %847 = vmatprep.subr.mxu0 0.0
        %848 = vmatpush1.msra.mxu0 0.0
        %849 = vmatprep.subr.mxu0 0.0
        %850 = vmatpush1.msra.mxu0 0.0
        %851 = vmatprep.subr.mxu0 0.0
        %852 = vmatpush1.msra.mxu0 0.0
        %853 = vmatprep.subr.mxu0 0.0
        %854 = vmatpush1.msra.mxu0 0.0
        %855 = vmatprep.subr.mxu0 0.0
        %856 = vmatpush1.msra.mxu0 0.0
        %857 = vmatprep.subr.mxu0 0.0
        %858 = vmatpush1.msra.mxu0 0.0
        %859 = vmatprep.subr.mxu0 0.0
        %860 = vmatpush1.msra.mxu0 0.0
        %861 = vmatprep.subr.mxu0 0.0
        %862 = vmatpush1.msra.mxu0 0.0
        %863 = vmatprep.subr.mxu0 0.0
        %864 = vmatpush1.msra.mxu0 0.0
        %865 = vmatprep.subr.mxu0 0.0
        %866 = vmatpush1.msra.mxu0 0.0
        %867 = vmatprep.subr.mxu0 0.0
        %868 = vmatpush1.msra.mxu0 0.0
        %869 = vmatprep.subr.mxu0 0.0
        %870 = vmatpush1.msra.mxu0 0.0
        %871 = vmatprep.subr.mxu0 0.0
        %872 = vmatpush1.msra.mxu0 0.0
        %873 = vmatprep.subr.mxu0 0.0
        %874 = vmatpush1.msra.mxu0 0.0
        %875 = vmatprep.subr.mxu0 0.0
        %876 = vmatpush1.msra.mxu0 0.0
        %877 = vmatprep.subr.mxu0 0.0
        %878 = vmatpush1.msra.mxu0 0.0
        %879 = vmatprep.subr.mxu0 0.0
        %880 = vmatpush1.msra.mxu0 0.0
        %881 = vmatprep.subr.mxu0 0.0
        %882 = vmatpush1.msra.mxu0 0.0
        %883 = vmatprep.subr.mxu0 0.0
        %884 = vmatpush1.msra.mxu0 0.0
        %885 = vmatprep.subr.mxu0 0.0
        %886 = vmatpush1.msra.mxu0 0.0
        %887 = vmatprep.subr.mxu0 0.0
        %888 = vmatpush1.msra.mxu0 0.0
        %889 = vmatprep.subr.mxu0 0.0
        %890 = vmatpush1.msra.mxu0 0.0
        %891 = vmatprep.subr.mxu0 0.0
        %892 = vmatpush1.msra.mxu0 0.0
        %893 = vmatprep.subr.mxu0 0.0
        %894 = vmatpush1.msra.mxu0 0.0
        %895 = vmatprep.subr.mxu0 0.0
        %896 = vmatpush1.msra.mxu0 0.0
        %897 = vmatprep.subr.mxu0 0.0
        %898 = vmatpush1.msra.mxu0 0.0
        %899 = vmatprep.subr.mxu0 0.0
        %900 = vmatpush1.msra.mxu0 0.0
        %901 = vmatprep.subr.mxu0 0.0
        %902 = vmatpush1.msra.mxu0 0.0
        %903 = vmatprep.subr.mxu0 0.0
        %904 = vmatpush1.msra.mxu0 0.0
        %905 = vmatprep.subr.mxu0 0.0
        %906 = vmatpush1.msra.mxu0 0.0
        %907 = vmatprep.subr.mxu0 0.0
        %908 = vmatpush1.msra.mxu0 0.0
        %909 = vmatprep.mubr.f32.mxu0 0.0
        %910 = vmatmul.mubr.f32.gmra.mrb[0].mxu0 %v836
        %v911 = vpop.f32.mrb[0].mxu0
        %v912 = vadd.f32 0.0, %v911
        %v913 = vpop.f32.mrb[0].mxu0
        %914 = vmatprep.mubr.f32.mxu0 0.0
        %915 = vmatmul.mubr.f32.gmra.mrb[0].mxu0 %v839
        %v916 = vpop.f32.mrb[0].mxu0
        %v917 = vadd.f32 0.0, %v916
        %v918 = vpop.f32.mrb[0].mxu0
        %919 = vdwg.mxu0
        %v921 = vsel %vm621, %v805, 0
        %v924 = vsel %vm621, %v806, 0
        %v927 = vsel %vm628, %v831, 0
        %929 = vmatprep.subr.mxu0 0.0
        %930 = vmatpush1.msra.mxu0 %v830
        %931 = vmatprep.subr.mxu0 0.0
        %932 = vmatpush1.msra.mxu0 %v927
        %933 = vmatprep.subr.mxu0 0.0
        %934 = vmatpush1.msra.mxu0 0.0
        %935 = vmatprep.subr.mxu0 0.0
        %936 = vmatpush1.msra.mxu0 0.0
        %937 = vmatprep.subr.mxu0 0.0
        %938 = vmatpush1.msra.mxu0 0.0
        %939 = vmatprep.subr.mxu0 0.0
        %940 = vmatpush1.msra.mxu0 0.0
        %941 = vmatprep.subr.mxu0 0.0
        %942 = vmatpush1.msra.mxu0 0.0
        %943 = vmatprep.subr.mxu0 0.0
        %944 = vmatpush1.msra.mxu0 0.0
        %945 = vmatprep.subr.mxu0 0.0
        %946 = vmatpush1.msra.mxu0 0.0
        %947 = vmatprep.subr.mxu0 0.0
        %948 = vmatpush1.msra.mxu0 0.0
        %949 = vmatprep.subr.mxu0 0.0
        %950 = vmatpush1.msra.mxu0 0.0
        %951 = vmatprep.subr.mxu0 0.0
        %952 = vmatpush1.msra.mxu0 0.0
        %953 = vmatprep.subr.mxu0 0.0
        %954 = vmatpush1.msra.mxu0 0.0
        %955 = vmatprep.subr.mxu0 0.0
        %956 = vmatpush1.msra.mxu0 0.0
        %957 = vmatprep.subr.mxu0 0.0
        %958 = vmatpush1.msra.mxu0 0.0
        %959 = vmatprep.subr.mxu0 0.0
        %960 = vmatpush1.msra.mxu0 0.0
        %961 = vmatprep.subr.mxu0 0.0
        %962 = vmatpush1.msra.mxu0 0.0
        %963 = vmatprep.subr.mxu0 0.0
        %964 = vmatpush1.msra.mxu0 0.0
        %965 = vmatprep.subr.mxu0 0.0
        %966 = vmatpush1.msra.mxu0 0.0
        %967 = vmatprep.subr.mxu0 0.0
        %968 = vmatpush1.msra.mxu0 0.0
        %969 = vmatprep.subr.mxu0 0.0
        %970 = vmatpush1.msra.mxu0 0.0
        %971 = vmatprep.subr.mxu0 0.0
        %972 = vmatpush1.msra.mxu0 0.0
        %973 = vmatprep.subr.mxu0 0.0
        %974 = vmatpush1.msra.mxu0 0.0
        %975 = vmatprep.subr.mxu0 0.0
        %976 = vmatpush1.msra.mxu0 0.0
        %977 = vmatprep.subr.mxu0 0.0
        %978 = vmatpush1.msra.mxu0 0.0
        %979 = vmatprep.subr.mxu0 0.0
        %980 = vmatpush1.msra.mxu0 0.0
        %981 = vmatprep.subr.mxu0 0.0
        %982 = vmatpush1.msra.mxu0 0.0
        %983 = vmatprep.subr.mxu0 0.0
        %984 = vmatpush1.msra.mxu0 0.0
        %985 = vmatprep.subr.mxu0 0.0
        %986 = vmatpush1.msra.mxu0 0.0
        %987 = vmatprep.subr.mxu0 0.0
        %988 = vmatpush1.msra.mxu0 0.0
        %989 = vmatprep.subr.mxu0 0.0
        %990 = vmatpush1.msra.mxu0 0.0
        %991 = vmatprep.subr.mxu0 0.0
        %992 = vmatpush1.msra.mxu0 0.0
        %993 = vmatprep.mubr.f32.mxu0 0.0
        %994 = vmatmul.mubr.f32.gmra.mrb[0].mxu0 %v921
        %v995 = vpop.f32.mrb[0].mxu0
        %v996 = vadd.f32 %v912, %v995
        %v997 = vpop.f32.mrb[0].mxu0
        %998 = vmatprep.mubr.f32.mxu0 0.0
        %999 = vmatmul.mubr.f32.gmra.mrb[0].mxu0 %v924
        %v1000 = vpop.f32.mrb[0].mxu0
        %v1001 = vadd.f32 %v917, %v1000
        %v1002 = vpop.f32.mrb[0].mxu0
        %1003 = vdwg.mxu0
        %1005 = vset.pattern.permute.xlu0 0
        %1006 = vperm.xlu0 %1005, %v809
        %v1007 = vpop.permute.xlu0 %1006
        %1010 = vset.pattern.permute.xlu0 0
        %1011 = vperm.xlu0 %1010, %v810
        %v1012 = vpop.permute.xlu0 %1011
        %v1014 = vadd.f32 %v996, %v1007
        %v1015 = vadd.f32 %v1001, %v1012
        %vm1016 = vcmp.gt.f32.partialorder %v1014, 0.0
        %vm1017 = vcmp.gt.f32.partialorder %v1015, 0.0
        %v1018 = vmul.f32 %v1014, 0.02
        %v1019 = vmul.f32 %v1015, 0.02
        %v1020 = vsel %vm1016, %v1014, %v1018
        %v1021 = vsel %vm1017, %v1015, %v1019
        %v1022 = vadd.f32 %v1020, 0.0
        %v1023 = vadd.f32 %v1021, 0.0
        %v1024 = vlaneseq
        %v1025 = vshrl.u32 %v1024, 7
        %v1026 = vsub.s32 1, %v1025
        %v1027 = vrot.slane %v583, %v1026
        %v1028 = vmul.f32 %v1027, %v583
        %v1029 = vlaneseq
        %v1030 = vshrl.u32 %v1029, 7
        %v1031 = vsub.s32 1, %v1030
        %v1032 = vrot.slane %v594, %v1031
        %1034 = vbcast.lane.b32.xlu0 %v1032, 256
        %v1035 = vpop.permute.xlu0 %1034
        %v1036 = vmul.f32 %v1028, %v1035
        %v1037 = vlaneseq
        %v1038 = vshrl.u32 %v1037, 7
        %v1039 = vsub.s32 1, %v1038
        %v1040 = vrot.slane %v606, %v1039
        %v1041 = vmul.f32 %v1040, %v586
        %v1042 = vmul.f32 %v1040, %v587
        %v1043 = vadd.f32 %v1041, %v716
        %v1044 = vadd.f32 %v1042, %v718
        %v1045 = vmul.f32 %v1040, %v1036
        %v1046 = vadd.f32 %v1045, %v804
        %v1048 = vsel %vm841, %v1046, 0
        %1050 = vmatprep.subr.mxu0 0.0
        %1051 = vmatpush1.msra.mxu0 %v1048
        %1052 = vmatprep.subr.mxu0 0.0
        %1053 = vmatpush1.msra.mxu0 0.0
        %1054 = vmatprep.subr.mxu0 0.0
        %1055 = vmatpush1.msra.mxu0 0.0
        %1056 = vmatprep.subr.mxu0 0.0
        %1057 = vmatpush1.msra.mxu0 0.0
        %1058 = vmatprep.subr.mxu0 0.0
        %1059 = vmatpush1.msra.mxu0 0.0
        %1060 = vmatprep.subr.mxu0 0.0
        %1061 = vmatpush1.msra.mxu0 0.0
        %1062 = vmatprep.subr.mxu0 0.0
        %1063 = vmatpush1.msra.mxu0 0.0
        %1064 = vmatprep.subr.mxu0 0.0
        %1065 = vmatpush1.msra.mxu0 0.0
        %1066 = vmatprep.subr.mxu0 0.0
        %1067 = vmatpush1.msra.mxu0 0.0
        %1068 = vmatprep.subr.mxu0 0.0
        %1069 = vmatpush1.msra.mxu0 0.0
        %1070 = vmatprep.subr.mxu0 0.0
        %1071 = vmatpush1.msra.mxu0 0.0
        %1072 = vmatprep.subr.mxu0 0.0
        %1073 = vmatpush1.msra.mxu0 0.0
        %1074 = vmatprep.subr.mxu0 0.0
        %1075 = vmatpush1.msra.mxu0 0.0
        %1076 = vmatprep.subr.mxu0 0.0
        %1077 = vmatpush1.msra.mxu0 0.0
        %1078 = vmatprep.subr.mxu0 0.0
        %1079 = vmatpush1.msra.mxu0 0.0
        %1080 = vmatprep.subr.mxu0 0.0
        %1081 = vmatpush1.msra.mxu0 0.0
        %1082 = vmatprep.subr.mxu0 0.0
        %1083 = vmatpush1.msra.mxu0 0.0
        %1084 = vmatprep.subr.mxu0 0.0
        %1085 = vmatpush1.msra.mxu0 0.0
        %1086 = vmatprep.subr.mxu0 0.0
        %1087 = vmatpush1.msra.mxu0 0.0
        %1088 = vmatprep.subr.mxu0 0.0
        %1089 = vmatpush1.msra.mxu0 0.0
        %1090 = vmatprep.subr.mxu0 0.0
        %1091 = vmatpush1.msra.mxu0 0.0
        %1092 = vmatprep.subr.mxu0 0.0
        %1093 = vmatpush1.msra.mxu0 0.0
        %1094 = vmatprep.subr.mxu0 0.0
        %1095 = vmatpush1.msra.mxu0 0.0
        %1096 = vmatprep.subr.mxu0 0.0
        %1097 = vmatpush1.msra.mxu0 0.0
        %1098 = vmatprep.subr.mxu0 0.0
        %1099 = vmatpush1.msra.mxu0 0.0
        %1100 = vmatprep.subr.mxu0 0.0
        %1101 = vmatpush1.msra.mxu0 0.0
        %1102 = vmatprep.subr.mxu0 0.0
        %1103 = vmatpush1.msra.mxu0 0.0
        %1104 = vmatprep.subr.mxu0 0.0
        %1105 = vmatpush1.msra.mxu0 0.0
        %1106 = vmatprep.subr.mxu0 0.0
        %1107 = vmatpush1.msra.mxu0 0.0
        %1108 = vmatprep.subr.mxu0 0.0
        %1109 = vmatpush1.msra.mxu0 0.0
        %1110 = vmatprep.subr.mxu0 0.0
        %1111 = vmatpush1.msra.mxu0 0.0
        %1112 = vmatprep.subr.mxu0 0.0
        %1113 = vmatpush1.msra.mxu0 0.0
        %1114 = vmatprep.mubr.f32.mxu0 0.0
        %1115 = vmatmul.mubr.f32.gmra.mrb[0].mxu0 %v836
        %v1116 = vpop.f32.mrb[0].mxu0
        %v1117 = vadd.f32 0.0, %v1116
        %v1118 = vpop.f32.mrb[0].mxu0
        %1119 = vmatprep.mubr.f32.mxu0 0.0
        %1120 = vmatmul.mubr.f32.gmra.mrb[0].mxu0 %v839
        %v1121 = vpop.f32.mrb[0].mxu0
        %v1122 = vadd.f32 0.0, %v1121
        %v1123 = vpop.f32.mrb[0].mxu0
        %1124 = vdwg.mxu0
        %v1126 = vsel %vm628, %v1044, 0
        %1128 = vmatprep.subr.mxu0 0.0
        %1129 = vmatpush1.msra.mxu0 %v1043
        %1130 = vmatprep.subr.mxu0 0.0
        %1131 = vmatpush1.msra.mxu0 %v1126
        %1132 = vmatprep.subr.mxu0 0.0
        %1133 = vmatpush1.msra.mxu0 0.0
        %1134 = vmatprep.subr.mxu0 0.0
        %1135 = vmatpush1.msra.mxu0 0.0
        %1136 = vmatprep.subr.mxu0 0.0
        %1137 = vmatpush1.msra.mxu0 0.0
        %1138 = vmatprep.subr.mxu0 0.0
        %1139 = vmatpush1.msra.mxu0 0.0
        %1140 = vmatprep.subr.mxu0 0.0
        %1141 = vmatpush1.msra.mxu0 0.0
        %1142 = vmatprep.subr.mxu0 0.0
        %1143 = vmatpush1.msra.mxu0 0.0
        %1144 = vmatprep.subr.mxu0 0.0
        %1145 = vmatpush1.msra.mxu0 0.0
        %1146 = vmatprep.subr.mxu0 0.0
        %1147 = vmatpush1.msra.mxu0 0.0
        %1148 = vmatprep.subr.mxu0 0.0
        %1149 = vmatpush1.msra.mxu0 0.0
        %1150 = vmatprep.subr.mxu0 0.0
        %1151 = vmatpush1.msra.mxu0 0.0
        %1152 = vmatprep.subr.mxu0 0.0
        %1153 = vmatpush1.msra.mxu0 0.0
        %1154 = vmatprep.subr.mxu0 0.0
        %1155 = vmatpush1.msra.mxu0 0.0
        %1156 = vmatprep.subr.mxu0 0.0
        %1157 = vmatpush1.msra.mxu0 0.0
        %1158 = vmatprep.subr.mxu0 0.0
        %1159 = vmatpush1.msra.mxu0 0.0
        %1160 = vmatprep.subr.mxu0 0.0
        %1161 = vmatpush1.msra.mxu0 0.0
        %1162 = vmatprep.subr.mxu0 0.0
        %1163 = vmatpush1.msra.mxu0 0.0
        %1164 = vmatprep.subr.mxu0 0.0
        %1165 = vmatpush1.msra.mxu0 0.0
        %1166 = vmatprep.subr.mxu0 0.0
        %1167 = vmatpush1.msra.mxu0 0.0
        %1168 = vmatprep.subr.mxu0 0.0
        %1169 = vmatpush1.msra.mxu0 0.0
        %1170 = vmatprep.subr.mxu0 0.0
        %1171 = vmatpush1.msra.mxu0 0.0
        %1172 = vmatprep.subr.mxu0 0.0
        %1173 = vmatpush1.msra.mxu0 0.0
        %1174 = vmatprep.subr.mxu0 0.0
        %1175 = vmatpush1.msra.mxu0 0.0
        %1176 = vmatprep.subr.mxu0 0.0
        %1177 = vmatpush1.msra.mxu0 0.0
        %1178 = vmatprep.subr.mxu0 0.0
        %1179 = vmatpush1.msra.mxu0 0.0
        %1180 = vmatprep.subr.mxu0 0.0
        %1181 = vmatpush1.msra.mxu0 0.0
        %1182 = vmatprep.subr.mxu0 0.0
        %1183 = vmatpush1.msra.mxu0 0.0
        %1184 = vmatprep.subr.mxu0 0.0
        %1185 = vmatpush1.msra.mxu0 0.0
        %1186 = vmatprep.subr.mxu0 0.0
        %1187 = vmatpush1.msra.mxu0 0.0
        %1188 = vmatprep.subr.mxu0 0.0
        %1189 = vmatpush1.msra.mxu0 0.0
        %1190 = vmatprep.subr.mxu0 0.0
        %1191 = vmatpush1.msra.mxu0 0.0
        %1192 = vmatprep.mubr.f32.mxu0 0.0
        %1193 = vmatmul.mubr.f32.gmra.mrb[0].mxu0 %v921
        %v1194 = vpop.f32.mrb[0].mxu0
        %v1195 = vadd.f32 %v1117, %v1194
        %v1196 = vpop.f32.mrb[0].mxu0
        %1197 = vmatprep.mubr.f32.mxu0 0.0
        %1198 = vmatmul.mubr.f32.gmra.mrb[0].mxu0 %v924
        %v1199 = vpop.f32.mrb[0].mxu0
        %v1200 = vadd.f32 %v1122, %v1199
        %v1201 = vpop.f32.mrb[0].mxu0
        %1202 = vdwg.mxu0
        %v1203 = vadd.f32 %v1195, %v1007
        %v1204 = vadd.f32 %v1200, %v1012
        %vm1205 = vcmp.gt.f32.partialorder %v1203, 0.0
        %vm1206 = vcmp.gt.f32.partialorder %v1204, 0.0
        %v1207 = vmul.f32 %v1203, 0.02
        %v1208 = vmul.f32 %v1204, 0.02
        %v1209 = vsel %vm1205, %v1203, %v1207
        %v1210 = vsel %vm1206, %v1204, %v1208
        %v1211 = vadd.f32 %v1022, %v1209
        %v1212 = vadd.f32 %v1023, %v1210
        %v1213 = vlaneseq
        %v1214 = vshrl.u32 %v1213, 7
        %v1215 = vsub.s32 2, %v1214
        %v1216 = vrot.slane %v583, %v1215
        %v1217 = vmul.f32 %v1216, %v583
        %v1218 = vlaneseq
        %v1219 = vshrl.u32 %v1218, 7
        %v1220 = vsub.s32 2, %v1219
        %v1221 = vrot.slane %v594, %v1220
        %1223 = vbcast.lane.b32.xlu0 %v1221, 256
        %v1224 = vpop.permute.xlu0 %1223
        %v1225 = vmul.f32 %v1217, %v1224
        %v1226 = vlaneseq
        %v1227 = vshrl.u32 %v1226, 7
        %v1228 = vsub.s32 2, %v1227
        %v1229 = vrot.slane %v606, %v1228
        %v1230 = vmul.f32 %v1229, %v588
        %v1231 = vmul.f32 %v1229, %v589
        %v1232 = vadd.f32 %v1230, %v716
        %v1233 = vadd.f32 %v1231, %v718
        %v1234 = vmul.f32 %v1229, %v1225
        %v1235 = vadd.f32 %v1234, %v804
        %v1237 = vsel %vm841, %v1235, 0
        %1239 = vmatprep.subr.mxu0 0.0
        %1240 = vmatpush1.msra.mxu0 %v1237
        %1241 = vmatprep.subr.mxu0 0.0
        %1242 = vmatpush1.msra.mxu0 0.0
        %1243 = vmatprep.subr.mxu0 0.0
        %1244 = vmatpush1.msra.mxu0 0.0
        %1245 = vmatprep.subr.mxu0 0.0
        %1246 = vmatpush1.msra.mxu0 0.0
        %1247 = vmatprep.subr.mxu0 0.0
        %1248 = vmatpush1.msra.mxu0 0.0
        %1249 = vmatprep.subr.mxu0 0.0
        %1250 = vmatpush1.msra.mxu0 0.0
        %1251 = vmatprep.subr.mxu0 0.0
        %1252 = vmatpush1.msra.mxu0 0.0
        %1253 = vmatprep.subr.mxu0 0.0
        %1254 = vmatpush1.msra.mxu0 0.0
        %1255 = vmatprep.subr.mxu0 0.0
        %1256 = vmatpush1.msra.mxu0 0.0
        %1257 = vmatprep.subr.mxu0 0.0
        %1258 = vmatpush1.msra.mxu0 0.0
        %1259 = vmatprep.subr.mxu0 0.0
        %1260 = vmatpush1.msra.mxu0 0.0
        %1261 = vmatprep.subr.mxu0 0.0
        %1262 = vmatpush1.msra.mxu0 0.0
        %1263 = vmatprep.subr.mxu0 0.0
        %1264 = vmatpush1.msra.mxu0 0.0
        %1265 = vmatprep.subr.mxu0 0.0
        %1266 = vmatpush1.msra.mxu0 0.0
        %1267 = vmatprep.subr.mxu0 0.0
        %1268 = vmatpush1.msra.mxu0 0.0
        %1269 = vmatprep.subr.mxu0 0.0
        %1270 = vmatpush1.msra.mxu0 0.0
        %1271 = vmatprep.subr.mxu0 0.0
        %1272 = vmatpush1.msra.mxu0 0.0
        %1273 = vmatprep.subr.mxu0 0.0
        %1274 = vmatpush1.msra.mxu0 0.0
        %1275 = vmatprep.subr.mxu0 0.0
        %1276 = vmatpush1.msra.mxu0 0.0
        %1277 = vmatprep.subr.mxu0 0.0
        %1278 = vmatpush1.msra.mxu0 0.0
        %1279 = vmatprep.subr.mxu0 0.0
        %1280 = vmatpush1.msra.mxu0 0.0
        %1281 = vmatprep.subr.mxu0 0.0
        %1282 = vmatpush1.msra.mxu0 0.0
        %1283 = vmatprep.subr.mxu0 0.0
        %1284 = vmatpush1.msra.mxu0 0.0
        %1285 = vmatprep.subr.mxu0 0.0
        %1286 = vmatpush1.msra.mxu0 0.0
        %1287 = vmatprep.subr.mxu0 0.0
        %1288 = vmatpush1.msra.mxu0 0.0
        %1289 = vmatprep.subr.mxu0 0.0
        %1290 = vmatpush1.msra.mxu0 0.0
        %1291 = vmatprep.subr.mxu0 0.0
        %1292 = vmatpush1.msra.mxu0 0.0
        %1293 = vmatprep.subr.mxu0 0.0
        %1294 = vmatpush1.msra.mxu0 0.0
        %1295 = vmatprep.subr.mxu0 0.0
        %1296 = vmatpush1.msra.mxu0 0.0
        %1297 = vmatprep.subr.mxu0 0.0
        %1298 = vmatpush1.msra.mxu0 0.0
        %1299 = vmatprep.subr.mxu0 0.0
        %1300 = vmatpush1.msra.mxu0 0.0
        %1301 = vmatprep.subr.mxu0 0.0
        %1302 = vmatpush1.msra.mxu0 0.0
        %1303 = vmatprep.mubr.f32.mxu0 0.0
        %1304 = vmatmul.mubr.f32.gmra.mrb[0].mxu0 %v836
        %v1305 = vpop.f32.mrb[0].mxu0
        %v1306 = vadd.f32 0.0, %v1305
        %v1307 = vpop.f32.mrb[0].mxu0
        %1308 = vmatprep.mubr.f32.mxu0 0.0
        %1309 = vmatmul.mubr.f32.gmra.mrb[0].mxu0 %v839
        %v1310 = vpop.f32.mrb[0].mxu0
        %v1311 = vadd.f32 0.0, %v1310
        %v1312 = vpop.f32.mrb[0].mxu0
        %1313 = vdwg.mxu0
        %v1315 = vsel %vm628, %v1233, 0
        %1317 = vmatprep.subr.mxu0 0.0
        %1318 = vmatpush1.msra.mxu0 %v1232
        %1319 = vmatprep.subr.mxu0 0.0
        %1320 = vmatpush1.msra.mxu0 %v1315
        %1321 = vmatprep.subr.mxu0 0.0
        %1322 = vmatpush1.msra.mxu0 0.0
        %1323 = vmatprep.subr.mxu0 0.0
        %1324 = vmatpush1.msra.mxu0 0.0
        %1325 = vmatprep.subr.mxu0 0.0
        %1326 = vmatpush1.msra.mxu0 0.0
        %1327 = vmatprep.subr.mxu0 0.0
        %1328 = vmatpush1.msra.mxu0 0.0
        %1329 = vmatprep.subr.mxu0 0.0
        %1330 = vmatpush1.msra.mxu0 0.0
        %1331 = vmatprep.subr.mxu0 0.0
        %1332 = vmatpush1.msra.mxu0 0.0
        %1333 = vmatprep.subr.mxu0 0.0
        %1334 = vmatpush1.msra.mxu0 0.0
        %1335 = vmatprep.subr.mxu0 0.0
        %1336 = vmatpush1.msra.mxu0 0.0
        %1337 = vmatprep.subr.mxu0 0.0
        %1338 = vmatpush1.msra.mxu0 0.0
        %1339 = vmatprep.subr.mxu0 0.0
        %1340 = vmatpush1.msra.mxu0 0.0
        %1341 = vmatprep.subr.mxu0 0.0
        %1342 = vmatpush1.msra.mxu0 0.0
        %1343 = vmatprep.subr.mxu0 0.0
        %1344 = vmatpush1.msra.mxu0 0.0
        %1345 = vmatprep.subr.mxu0 0.0
        %1346 = vmatpush1.msra.mxu0 0.0
        %1347 = vmatprep.subr.mxu0 0.0
        %1348 = vmatpush1.msra.mxu0 0.0
        %1349 = vmatprep.subr.mxu0 0.0
        %1350 = vmatpush1.msra.mxu0 0.0
        %1351 = vmatprep.subr.mxu0 0.0
        %1352 = vmatpush1.msra.mxu0 0.0
        %1353 = vmatprep.subr.mxu0 0.0
        %1354 = vmatpush1.msra.mxu0 0.0
        %1355 = vmatprep.subr.mxu0 0.0
        %1356 = vmatpush1.msra.mxu0 0.0
        %1357 = vmatprep.subr.mxu0 0.0
        %1358 = vmatpush1.msra.mxu0 0.0
        %1359 = vmatprep.subr.mxu0 0.0
        %1360 = vmatpush1.msra.mxu0 0.0
        %1361 = vmatprep.subr.mxu0 0.0
        %1362 = vmatpush1.msra.mxu0 0.0
        %1363 = vmatprep.subr.mxu0 0.0
        %1364 = vmatpush1.msra.mxu0 0.0
        %1365 = vmatprep.subr.mxu0 0.0
        %1366 = vmatpush1.msra.mxu0 0.0
        %1367 = vmatprep.subr.mxu0 0.0
        %1368 = vmatpush1.msra.mxu0 0.0
        %1369 = vmatprep.subr.mxu0 0.0
        %1370 = vmatpush1.msra.mxu0 0.0
        %1371 = vmatprep.subr.mxu0 0.0
        %1372 = vmatpush1.msra.mxu0 0.0
        %1373 = vmatprep.subr.mxu0 0.0
        %1374 = vmatpush1.msra.mxu0 0.0
        %1375 = vmatprep.subr.mxu0 0.0
        %1376 = vmatpush1.msra.mxu0 0.0
        %1377 = vmatprep.subr.mxu0 0.0
        %1378 = vmatpush1.msra.mxu0 0.0
        %1379 = vmatprep.subr.mxu0 0.0
        %1380 = vmatpush1.msra.mxu0 0.0
        %1381 = vmatprep.mubr.f32.mxu0 0.0
        %1382 = vmatmul.mubr.f32.gmra.mrb[0].mxu0 %v921
        %v1383 = vpop.f32.mrb[0].mxu0
        %v1384 = vadd.f32 %v1306, %v1383
        %v1385 = vpop.f32.mrb[0].mxu0
        %1386 = vmatprep.mubr.f32.mxu0 0.0
        %1387 = vmatmul.mubr.f32.gmra.mrb[0].mxu0 %v924
        %v1388 = vpop.f32.mrb[0].mxu0
        %v1389 = vadd.f32 %v1311, %v1388
        %v1390 = vpop.f32.mrb[0].mxu0
        %1391 = vdwg.mxu0
        %v1392 = vadd.f32 %v1384, %v1007
        %v1393 = vadd.f32 %v1389, %v1012
        %vm1394 = vcmp.gt.f32.partialorder %v1392, 0.0
        %vm1395 = vcmp.gt.f32.partialorder %v1393, 0.0
        %v1396 = vmul.f32 %v1392, 0.02
        %v1397 = vmul.f32 %v1393, 0.02
        %v1398 = vsel %vm1394, %v1392, %v1396
        %v1399 = vsel %vm1395, %v1393, %v1397
        %v1400 = vadd.f32 %v1211, %v1398
        %v1401 = vadd.f32 %v1212, %v1399
        %v1402 = vlaneseq
        %v1403 = vshrl.u32 %v1402, 7
        %v1404 = vsub.s32 3, %v1403
        %v1405 = vrot.slane %v583, %v1404
        %v1406 = vmul.f32 %v1405, %v583
        %v1407 = vlaneseq
        %v1408 = vshrl.u32 %v1407, 7
        %v1409 = vsub.s32 3, %v1408
        %v1410 = vrot.slane %v594, %v1409
        %1412 = vbcast.lane.b32.xlu0 %v1410, 256
        %v1413 = vpop.permute.xlu0 %1412
        %v1414 = vmul.f32 %v1406, %v1413
        %v1415 = vlaneseq
        %v1416 = vshrl.u32 %v1415, 7
        %v1417 = vsub.s32 3, %v1416
        %v1418 = vrot.slane %v606, %v1417
        %v1419 = vmul.f32 %v1418, %v590
        %v1420 = vmul.f32 %v1418, %v591
        %v1421 = vadd.f32 %v1419, %v716
        %v1422 = vadd.f32 %v1420, %v718
        %v1423 = vmul.f32 %v1418, %v1414
        %v1424 = vadd.f32 %v1423, %v804
        %v1426 = vsel %vm841, %v1424, 0
        %1428 = vmatprep.subr.mxu0 0.0
        %1429 = vmatpush1.msra.mxu0 %v1426
        %1430 = vmatprep.subr.mxu0 0.0
        %1431 = vmatpush1.msra.mxu0 0.0
        %1432 = vmatprep.subr.mxu0 0.0
        %1433 = vmatpush1.msra.mxu0 0.0
        %1434 = vmatprep.subr.mxu0 0.0
        %1435 = vmatpush1.msra.mxu0 0.0
        %1436 = vmatprep.subr.mxu0 0.0
        %1437 = vmatpush1.msra.mxu0 0.0
        %1438 = vmatprep.subr.mxu0 0.0
        %1439 = vmatpush1.msra.mxu0 0.0
        %1440 = vmatprep.subr.mxu0 0.0
        %1441 = vmatpush1.msra.mxu0 0.0
        %1442 = vmatprep.subr.mxu0 0.0
        %1443 = vmatpush1.msra.mxu0 0.0
        %1444 = vmatprep.subr.mxu0 0.0
        %1445 = vmatpush1.msra.mxu0 0.0
        %1446 = vmatprep.subr.mxu0 0.0
        %1447 = vmatpush1.msra.mxu0 0.0
        %1448 = vmatprep.subr.mxu0 0.0
        %1449 = vmatpush1.msra.mxu0 0.0
        %1450 = vmatprep.subr.mxu0 0.0
        %1451 = vmatpush1.msra.mxu0 0.0
        %1452 = vmatprep.subr.mxu0 0.0
        %1453 = vmatpush1.msra.mxu0 0.0
        %1454 = vmatprep.subr.mxu0 0.0
        %1455 = vmatpush1.msra.mxu0 0.0
        %1456 = vmatprep.subr.mxu0 0.0
        %1457 = vmatpush1.msra.mxu0 0.0
        %1458 = vmatprep.subr.mxu0 0.0
        %1459 = vmatpush1.msra.mxu0 0.0
        %1460 = vmatprep.subr.mxu0 0.0
        %1461 = vmatpush1.msra.mxu0 0.0
        %1462 = vmatprep.subr.mxu0 0.0
        %1463 = vmatpush1.msra.mxu0 0.0
        %1464 = vmatprep.subr.mxu0 0.0
        %1465 = vmatpush1.msra.mxu0 0.0
        %1466 = vmatprep.subr.mxu0 0.0
        %1467 = vmatpush1.msra.mxu0 0.0
        %1468 = vmatprep.subr.mxu0 0.0
        %1469 = vmatpush1.msra.mxu0 0.0
        %1470 = vmatprep.subr.mxu0 0.0
        %1471 = vmatpush1.msra.mxu0 0.0
        %1472 = vmatprep.subr.mxu0 0.0
        %1473 = vmatpush1.msra.mxu0 0.0
        %1474 = vmatprep.subr.mxu0 0.0
        %1475 = vmatpush1.msra.mxu0 0.0
        %1476 = vmatprep.subr.mxu0 0.0
        %1477 = vmatpush1.msra.mxu0 0.0
        %1478 = vmatprep.subr.mxu0 0.0
        %1479 = vmatpush1.msra.mxu0 0.0
        %1480 = vmatprep.subr.mxu0 0.0
        %1481 = vmatpush1.msra.mxu0 0.0
        %1482 = vmatprep.subr.mxu0 0.0
        %1483 = vmatpush1.msra.mxu0 0.0
        %1484 = vmatprep.subr.mxu0 0.0
        %1485 = vmatpush1.msra.mxu0 0.0
        %1486 = vmatprep.subr.mxu0 0.0
        %1487 = vmatpush1.msra.mxu0 0.0
        %1488 = vmatprep.subr.mxu0 0.0
        %1489 = vmatpush1.msra.mxu0 0.0
        %1490 = vmatprep.subr.mxu0 0.0
        %1491 = vmatpush1.msra.mxu0 0.0
        %1492 = vmatprep.mubr.f32.mxu0 0.0
        %1493 = vmatmul.mubr.f32.gmra.mrb[0].mxu0 %v836
        %v1494 = vpop.f32.mrb[0].mxu0
        %v1495 = vadd.f32 0.0, %v1494
        %v1496 = vpop.f32.mrb[0].mxu0
        %1497 = vmatprep.mubr.f32.mxu0 0.0
        %1498 = vmatmul.mubr.f32.gmra.mrb[0].mxu0 %v839
        %v1499 = vpop.f32.mrb[0].mxu0
        %v1500 = vadd.f32 0.0, %v1499
        %v1501 = vpop.f32.mrb[0].mxu0
        %1502 = vdwg.mxu0
        %v1504 = vsel %vm628, %v1422, 0
        %1506 = vmatprep.subr.mxu0 0.0
        %1507 = vmatpush1.msra.mxu0 %v1421
        %1508 = vmatprep.subr.mxu0 0.0
        %1509 = vmatpush1.msra.mxu0 %v1504
        %1510 = vmatprep.subr.mxu0 0.0
        %1511 = vmatpush1.msra.mxu0 0.0
        %1512 = vmatprep.subr.mxu0 0.0
        %1513 = vmatpush1.msra.mxu0 0.0
        %1514 = vmatprep.subr.mxu0 0.0
        %1515 = vmatpush1.msra.mxu0 0.0
        %1516 = vmatprep.subr.mxu0 0.0
        %1517 = vmatpush1.msra.mxu0 0.0
        %1518 = vmatprep.subr.mxu0 0.0
        %1519 = vmatpush1.msra.mxu0 0.0
        %1520 = vmatprep.subr.mxu0 0.0
        %1521 = vmatpush1.msra.mxu0 0.0
        %1522 = vmatprep.subr.mxu0 0.0
        %1523 = vmatpush1.msra.mxu0 0.0
        %1524 = vmatprep.subr.mxu0 0.0
        %1525 = vmatpush1.msra.mxu0 0.0
        %1526 = vmatprep.subr.mxu0 0.0
        %1527 = vmatpush1.msra.mxu0 0.0
        %1528 = vmatprep.subr.mxu0 0.0
        %1529 = vmatpush1.msra.mxu0 0.0
        %1530 = vmatprep.subr.mxu0 0.0
        %1531 = vmatpush1.msra.mxu0 0.0
        %1532 = vmatprep.subr.mxu0 0.0
        %1533 = vmatpush1.msra.mxu0 0.0
        %1534 = vmatprep.subr.mxu0 0.0
        %1535 = vmatpush1.msra.mxu0 0.0
        %1536 = vmatprep.subr.mxu0 0.0
        %1537 = vmatpush1.msra.mxu0 0.0
        %1538 = vmatprep.subr.mxu0 0.0
        %1539 = vmatpush1.msra.mxu0 0.0
        %1540 = vmatprep.subr.mxu0 0.0
        %1541 = vmatpush1.msra.mxu0 0.0
        %1542 = vmatprep.subr.mxu0 0.0
        %1543 = vmatpush1.msra.mxu0 0.0
        %1544 = vmatprep.subr.mxu0 0.0
        %1545 = vmatpush1.msra.mxu0 0.0
        %1546 = vmatprep.subr.mxu0 0.0
        %1547 = vmatpush1.msra.mxu0 0.0
        %1548 = vmatprep.subr.mxu0 0.0
        %1549 = vmatpush1.msra.mxu0 0.0
        %1550 = vmatprep.subr.mxu0 0.0
        %1551 = vmatpush1.msra.mxu0 0.0
        %1552 = vmatprep.subr.mxu0 0.0
        %1553 = vmatpush1.msra.mxu0 0.0
        %1554 = vmatprep.subr.mxu0 0.0
        %1555 = vmatpush1.msra.mxu0 0.0
        %1556 = vmatprep.subr.mxu0 0.0
        %1557 = vmatpush1.msra.mxu0 0.0
        %1558 = vmatprep.subr.mxu0 0.0
        %1559 = vmatpush1.msra.mxu0 0.0
        %1560 = vmatprep.subr.mxu0 0.0
        %1561 = vmatpush1.msra.mxu0 0.0
        %1562 = vmatprep.subr.mxu0 0.0
        %1563 = vmatpush1.msra.mxu0 0.0
        %1564 = vmatprep.subr.mxu0 0.0
        %1565 = vmatpush1.msra.mxu0 0.0
        %1566 = vmatprep.subr.mxu0 0.0
        %1567 = vmatpush1.msra.mxu0 0.0
        %1568 = vmatprep.subr.mxu0 0.0
        %1569 = vmatpush1.msra.mxu0 0.0
        %1570 = vmatprep.mubr.f32.mxu0 0.0
        %1571 = vmatmul.mubr.f32.gmra.mrb[0].mxu0 %v921
        %v1572 = vpop.f32.mrb[0].mxu0
        %v1573 = vadd.f32 %v1495, %v1572
        %v1574 = vpop.f32.mrb[0].mxu0
        %1575 = vmatprep.mubr.f32.mxu0 0.0
        %1576 = vmatmul.mubr.f32.gmra.mrb[0].mxu0 %v924
        %v1577 = vpop.f32.mrb[0].mxu0
        %v1578 = vadd.f32 %v1500, %v1577
        %v1579 = vpop.f32.mrb[0].mxu0
        %1580 = vdwg.mxu0
        %v1581 = vadd.f32 %v1573, %v1007
        %v1582 = vadd.f32 %v1578, %v1012
        %vm1583 = vcmp.gt.f32.partialorder %v1581, 0.0
        %vm1584 = vcmp.gt.f32.partialorder %v1582, 0.0
        %v1585 = vmul.f32 %v1581, 0.02
        %v1586 = vmul.f32 %v1582, 0.02
        %v1587 = vsel %vm1583, %v1581, %v1585
        %v1588 = vsel %vm1584, %v1582, %v1586
        %v1589 = vadd.f32 %v1400, %v1587
        %v1590 = vadd.f32 %v1401, %v1588
        %v1591 = vmul.f32 %v1589, 0.25
        %v1592 = vmul.f32 %v1590, 0.25
        %vm1593 = vcmask 130048
        %1594 = vst.msk [vmem:[%s547] sm:$0xff] %vm1593, %v1591
        %1595 = vst.msk [vmem:[%s547 + $0x8] sm:$0xff] %vm1593, %v1592
        %s1596 = sand.u32 %s356, 1
        %s1597 = scalar_lea.sflag [#allocation3], %s1596
        %s1598 = sand.u32 %s356, 1
        %s1599 = smul.addr %s1598, 16
        %s1600 = scalar_lea.vmem [#allocation5], %s1599
        // Predicated region
        $region77: #{molconv2_forward.5} parent=71 // pred_check
          %p1601 = pneg %p366
        $region78: #{molconv2_forward.5} parent=71 // pred_check_branch
          %1603 = sbr.rel (%p1601) target = $region80
        $region79: #{molconv2_forward.5} parent=71 // pred_region
          %s1605 = ssub.s32 256, 256
          %1606 = vsyncadd %s1597, %s1605
          %s1607 = smul.addr %s32, 2
          %s1608 = sadd.s32 %s33, %s1607
          %s1609 = smul.addr %s1608, 128
          %s1610 = scalar_lea.hbm %s13, %s1609
          %s1611 = sshll.u32 %s1600, 4
          %s1612 = int_to_ptr.vmem [resolvable:$true] %s1611
          %1617 = dma.vmem_to_hbm [thread:$0]  %s1612, 256, %s1610, %s1597, 128, 128, 8
        $region80: #{molconv2_forward.5} parent=71 // pred_fallthru
          _
      $region72: #{molconv2_forward.5} parent=5 // pred_fallthru
        _
      %p1618 = scmp.le.s32.totalorder 2, %s23
      // Predicated region
      $region81: #{molconv2_forward.5} parent=5 // pred_check
        %p1619 = pneg %p1618
      $region82: #{molconv2_forward.5} parent=5 // pred_check_branch
        %1621 = sbr.rel (%p1619) target = $region84
      $region83: #{molconv2_forward.5} parent=5 // pred_region
        %s1622 = ssub.s32 %s23, 2
        // Predicated region
        $region85: #{molconv2_forward.5} parent=83 // pred_check
          %p1623 = pneg %p372
        $region86: #{molconv2_forward.5} parent=83 // pred_check_branch
          %1625 = sbr.rel (%p1623) target = $region88
        $region87: #{molconv2_forward.5} parent=83 // pred_region
          %s1626 = sand.u32 %s357, 1
          %s1627 = scalar_lea.sflag [#allocation3], %s1626
          %s1628 = sand.u32 %s357, 1
          %s1629 = smul.addr %s1628, 16
          %s1630 = scalar_lea.vmem [#allocation5], %s1629
          %1631 = dma.done %s1627, 256
        $region88: #{molconv2_forward.5} parent=83 // pred_fallthru
          _
      $region84: #{molconv2_forward.5} parent=5 // pred_fallthru
        _
    $region6: #{molconv2_forward.5} parent=1 // loop_footer
      %s27 = sadd.s32 1, %s23
    $region7: #{molconv2_forward.5} parent=1 // loop_footer_branch
      %22 = sbr.rel target = $region3
    $region8: #{molconv2_forward.5} parent=1 // loop_exit
      _
    %1632 = vsyncpa [#allocation3], 1
    %s1633 = scalar_lea.sflag [#allocation3], 1
    %1634 = vsyncpa %s1633, 1
    %1635 = vsyncpa [#allocation4], 1
    %s1636 = scalar_lea.sflag [#allocation4], 1
    %1637 = vsyncpa %s1636, 1

</llo_original>
